<compile_context>
chip_gen: v7x
topology: tpu7x:2x2x1
jax: 0.10.0
libtpu: 0.0.40
codegen_flags: <defaults>
</compile_context>

<pallas_src>
import math
import numpy as np
import jax
import jax.numpy as jnp
from jax.experimental import pallas as pl
from jax.experimental.pallas import tpu as pltpu


NEG = -3.0e38  # additive mask bias / max identity; safe in f32 (compute never leaves f32)


def _round_up(x, m):
    return ((x + m - 1) // m) * m


# ----------------------------------------------------------------------------
# Graph construction glue (data-dependent, variable-size) -- host-side numpy
# ----------------------------------------------------------------------------
def fps_np(pos, batch, ratio):
    """Farthest point sampling per batch element (deterministic start)."""
    # TODO(synk): torch_cluster's fps uses a random start point per batch element; we start
    # at the first point of each batch element, so sampled indices can differ from PyTorch.
    pos = np.asarray(pos, np.float64)
    batch = np.asarray(batch)
    selected = []
    for b in np.unique(batch):
        pts = np.where(batch == b)[0]
        n = len(pts)
        n_samples = int(math.ceil(ratio * n))
        dist = np.full(n, np.inf)
        cur = 0
        for _ in range(n_samples):
            selected.append(int(pts[cur]))
            dist = np.minimum(dist, ((pos[pts] - pos[pts[cur]]) ** 2).sum(-1))
            cur = int(np.argmax(dist))
    return np.asarray(selected, dtype=np.int64)


def radius_dense_np(pos, qpos, r, batch, qbatch, k_max):
    """Vectorized radius query: for each query, up to k_max same-batch points within r
    (in index order, like torch_cluster), as a dense [M, k_max] table + validity mask."""
    d2 = ((qpos[:, None, :] - pos[None, :, :]) ** 2).sum(-1)          # [M, N]
    valid = (d2 <= r * r) & (qbatch[:, None] == batch[None, :])       # [M, N]
    order = np.argsort(~valid, axis=1, kind="stable")                 # valid columns first
    nbr = order[:, :k_max]                                            # [M, K]
    counts = np.minimum(valid.sum(axis=1), k_max)
    mask = np.arange(k_max)[None, :] < counts[:, None]                # [M, K] bool
    return nbr, mask


# ----------------------------------------------------------------------------
# Pallas kernel: per-edge local MLP + masked max aggregation (lane-dense layout)
# ----------------------------------------------------------------------------
def pointnet_conv_kernel(rel_ref, maskb_ref, w1t_ref, b1_ref, w2t_ref, b2_ref, out_ref):
    # rel_ref  : [K, C_in, TM] bf16   pos_j - pos_i per neighbor slot (0 where invalid)
    # maskb_ref: [K, TM]       f32    additive mask bias: 0.0 valid, NEG invalid
    # w1t_ref  : [H, C_in] f32   b1_ref: [H, 1] f32
    # w2t_ref  : [C_out, H] f32  b2_ref: [C_out, 1] f32
    # out_ref  : [C_out, TM]   f32    (queries on the lane axis)
    K, C_in, TM = rel_ref.shape
    H = w1t_ref.shape[0]
    C_out = out_ref.shape[0]

    w2t = w2t_ref[...]
    w1t = w1t_ref[...]
    # Hoist loop-invariant broadcasts out of the K loop (JAX does not CSE broadcast_in_dim).
    w1b = [jnp.broadcast_to(w1t[:, c:c + 1], (H, TM)) for c in range(C_in)]
    b1b = jnp.broadcast_to(b1_ref[...], (H, TM))
    b2b = jnp.broadcast_to(b2_ref[...], (C_out, TM))

    mx = jnp.full((C_out, TM), NEG, dtype=jnp.float32)
    for k in range(K):  # K is small & static; leading-axis loads + running-max accumulator
        rel_k = rel_ref[k].astype(jnp.float32)                  # [C_in, TM]
        # Layer 1 on the VPU: contraction dim C_in (=3) is degenerate for the MXU.
        h = b1b
        for c in range(C_in):
            h = h + w1b[c] * rel_k[c:c + 1, :]                  # [H,TM] * [1,TM]
        h = jnp.maximum(h, 0.0)
        # Layer 2 on the MXU.
        yk = jnp.dot(w2t, h, preferred_element_type=jnp.float32) + b2b   # [C_out, TM]
        mx = jnp.maximum(mx, yk + maskb_ref[pl.ds(k, 1), :])    # additive mask bias
    # PyG max-aggregation yields 0 for nodes with no incoming messages.
    any_valid = jnp.max(maskb_ref[...], axis=0, keepdims=True)  # [1, TM]: 0 or NEG
    out_ref[...] = jnp.where(any_valid > jnp.float32(-1.0), mx,
                             jnp.float32(0.0)).astype(out_ref.dtype)


def pointnet_conv_pallas(rel3, maskb, w1, b1, w2, b2, *, tile_m=1024):
    """rel3: [K, C_in, M_pad] (bf16), maskb: [K, M_pad] f32 -> out [C_out, M_pad] f32."""
    K, C_in, M_pad = rel3.shape
    H = np.asarray(w1).shape[1]
    C_out = np.asarray(w2).shape[1]
    TM = min(tile_m, M_pad)
    assert M_pad % TM == 0 and (TM % 128 == 0 or TM == M_pad)
    grid = (M_pad // TM,)

    # Weights in lane-dense orientation (outputs on sublanes, broadcast over lanes).
    w1t = jnp.asarray(w1, jnp.float32).T            # [H, C_in]
    b1c = jnp.asarray(b1, jnp.float32).reshape(H, 1)
    w2t = jnp.asarray(w2, jnp.float32).T            # [C_out, H]
    b2c = jnp.asarray(b2, jnp.float32).reshape(C_out, 1)

    bytes_accessed = int(rel3.size * rel3.dtype.itemsize + maskb.size * 4
                         + C_out * M_pad * 4
                         + (H * C_in + H + C_out * H + C_out) * 4)
    cost = pl.CostEstimate(flops=2 * K * M_pad * (C_in * H + H * C_out),
                           transcendentals=0, bytes_accessed=bytes_accessed)

    return pl.pallas_call(
        pointnet_conv_kernel,
        out_shape=jax.ShapeDtypeStruct((C_out, M_pad), jnp.float32),
        grid=grid,
        in_specs=[
            pl.BlockSpec((K, C_in, TM), lambda i: (0, 0, i)),
            pl.BlockSpec((K, TM), lambda i: (0, i)),
            pl.BlockSpec((H, C_in), lambda i: (0, 0)),
            pl.BlockSpec((H, 1), lambda i: (0, 0)),
            pl.BlockSpec((C_out, H), lambda i: (0, 0)),
            pl.BlockSpec((C_out, 1), lambda i: (0, 0)),
        ],
        out_specs=pl.BlockSpec((C_out, TM), lambda i: (0, i)),
        compiler_params=pltpu.CompilerParams(
            dimension_semantics=("parallel",),           # megacore split on v7x
            vmem_limit_bytes=32 * 1024 * 1024),
        cost_estimate=cost,
    )(rel3, maskb, w1t, b1c, w2t, b2c)


# ----------------------------------------------------------------------------
# Full PointNetModule forward
# ----------------------------------------------------------------------------
def pointnet_module_forward(pos, batch, params, *, fps_ratio, cluster_radius,
                            max_number_neighbors, tile_m=1024):
    pos_np = np.asarray(pos, np.float32)
    batch_np = np.asarray(batch)
    N, C_in = pos_np.shape
    K = max_number_neighbors
    w1, b1, w2, b2 = params
    C_out = np.asarray(w2).shape[1]

    # 1) fps -> query ids;  2) radius -> dense [M, K] neighbor slots (vectorized)
    idx = fps_np(pos_np, batch_np, fps_ratio)
    M = idx.shape[0]
    nbr, mask = radius_dense_np(pos_np, pos_np[idx], cluster_radius,
                                batch_np, batch_np[idx], K)

    # 3) lane-dense slabs (queries on the 128-lane axis), padded to a multiple of TM.
    #    module-as-written semantics: pos_i = pos[row] with row in [0, M).
    rel = pos_np[nbr] - pos_np[:M][:, None, :]                         # [M, K, C_in]
    rel = np.where(mask[:, :, None], rel, 0.0).astype(np.float32)
    TM = min(tile_m, _round_up(max(M, 1), 128))
    M_pad = _round_up(max(M, 1), TM)
    rel3 = np.zeros((K, C_in, M_pad), np.float32)
    rel3[:, :, :M] = np.transpose(rel, (1, 2, 0))                      # [K, C_in, M]
    maskb = np.full((K, M_pad), NEG, np.float32)                       # additive mask bias
    maskb[:, :M] = np.where(mask.T, 0.0, NEG)

    rel3_bf16 = jnp.asarray(rel3, jnp.bfloat16)    # halve HBM bytes of the dominant stream
    out_cm = pointnet_conv_pallas(rel3_bf16, jnp.asarray(maskb),
                                  w1, b1, w2, b2, tile_m=TM)           # [C_out, M_pad]

    # 4) [C_out, M_pad] -> [N, C_out]; rows [M, N) receive no messages -> stay zero.
    out_q = out_cm[:, :M].T
    out = jax.lax.dynamic_update_slice(jnp.zeros((N, C_out), jnp.float32), out_q, (0, 0))

    aux = dict(rel3_rounded=np.asarray(rel3_bf16.astype(jnp.float32)),
               maskb=maskb, M=M, M_pad=M_pad)
    return out, aux


def reference_np(rel3, maskb, params):
    """Pure-numpy reference of the kernel math on the same lane-dense slabs."""
    w1, b1, w2, b2 = (np.asarray(p, np.float32) for p in params)
    h = np.maximum(np.einsum("kcm,ch->khm", rel3, w1) + b1.reshape(1, -1, 1), 0.0)
    y = np.einsum("khm,ho->kom", h, w2) + b2.reshape(1, -1, 1)
    y = y + maskb[:, None, :]
    mx = y.max(axis=0)                                                 # [C_out, M_pad]
    anyv = maskb.max(axis=0, keepdims=True)
    return np.where(anyv > -1.0, mx, 0.0)                              # [C_out, M_pad]


if __name__ == "__main__":
    key = jax.random.PRNGKey(0)
    k_pos, k_w1, k_b1, k_w2, k_b2 = jax.random.split(key, 5)

    # Small example: 2 graphs x 8 points, 3-D positions.
    N, D = 16, 3
    pos = jax.random.uniform(k_pos, (N, D), dtype=jnp.float32)
    batch = jnp.concatenate([jnp.zeros(8, jnp.int32), jnp.ones(8, jnp.int32)])

    # local_mlp: Linear(3, 32) -> ReLU -> Linear(32, 32)
    # TODO(synk): PyG's MLP default also inserts BatchNorm/dropout; the synthetic local_nn
    # here is plain Linear + ReLU + Linear.
    H, C_out = 32, 32
    w1 = jax.random.normal(k_w1, (D, H), dtype=jnp.float32) * 0.5
    b1 = jax.random.normal(k_b1, (H,), dtype=jnp.float32) * 0.1
    w2 = jax.random.normal(k_w2, (H, C_out), dtype=jnp.float32) * 0.3
    b2 = jax.random.normal(k_b2, (C_out,), dtype=jnp.float32) * 0.1
    params = (w1, b1, w2, b2)

    out, aux = pointnet_module_forward(
        pos, batch, params,
        fps_ratio=0.5, cluster_radius=0.4, max_number_neighbors=10)
    out = jax.block_until_ready(out)

    M = aux["M"]
    ref_q = reference_np(aux["rel3_rounded"], aux["maskb"],
                         tuple(np.asarray(p) for p in params))         # [C_out, M_pad]
    ref = np.zeros((N, C_out), np.float32)
    ref[:M] = ref_q[:, :M].T

    assert out.shape == (N, C_out), out.shape
    np.testing.assert_allclose(np.asarray(out), ref, rtol=1e-3, atol=1e-3)
    print("KERNEL_OK")
</pallas_src>

<mosaic_0001>
module attributes {stable_mosaic.version = 11 : i64} {
  func.func @pointnet_conv_kernel(%arg0: i32, %arg1: memref<10x3x128xbf16, #tpu.memory_space<vmem>>, %arg2: memref<10x128xf32, #tpu.memory_space<vmem>>, %arg3: memref<32x3xf32, #tpu.memory_space<vmem>>, %arg4: memref<32x1xf32, #tpu.memory_space<vmem>>, %arg5: memref<32x32xf32, #tpu.memory_space<vmem>>, %arg6: memref<32x1xf32, #tpu.memory_space<vmem>>, %arg7: memref<32x128xf32, #tpu.memory_space<vmem>>) attributes {dimension_semantics = [#tpu.dimension_semantics<parallel>], iteration_bounds = array<i64: 1>, scalar_prefetch = 0 : i64, scratch_operands = 0 : i64, tpu.core_type = #tpu.core_type<tc>, window_params = [{transform_indices = @transform_0, window_bounds = array<i64: 10, 3, 128>}, {transform_indices = @transform_1, window_bounds = array<i64: 10, 128>}, {pipeline_mode = #tpu.pipeline_mode<synchronous>, transform_indices = @transform_2, window_bounds = array<i64: 32, 3>}, {pipeline_mode = #tpu.pipeline_mode<synchronous>, transform_indices = @transform_3, window_bounds = array<i64: 32, 1>}, {pipeline_mode = #tpu.pipeline_mode<synchronous>, transform_indices = @transform_4, window_bounds = array<i64: 32, 32>}, {pipeline_mode = #tpu.pipeline_mode<synchronous>, transform_indices = @transform_5, window_bounds = array<i64: 32, 1>}, {transform_indices = @transform_6, window_bounds = array<i64: 32, 128>}]} {
    %c0 = arith.constant 0 : index
    %c0_0 = arith.constant 0 : index
    %0 = vector.load %arg5[%c0, %c0_0] : memref<32x32xf32, #tpu.memory_space<vmem>>, vector<32x32xf32>
    %c0_1 = arith.constant 0 : index
    %c0_2 = arith.constant 0 : index
    %1 = vector.load %arg3[%c0_1, %c0_2] : memref<32x3xf32, #tpu.memory_space<vmem>>, vector<32x3xf32>
    %2 = vector.extract_strided_slice %1 {offsets = [0, 0], sizes = [32, 1], strides = [1, 1]} : vector<32x3xf32> to vector<32x1xf32>
    %3 = vector.shape_cast %2 : vector<32x1xf32> to vector<32x1xf32>
    %4 = vector.broadcast %3 : vector<32x1xf32> to vector<32x128xf32>
    %5 = vector.extract_strided_slice %1 {offsets = [0, 1], sizes = [32, 1], strides = [1, 1]} : vector<32x3xf32> to vector<32x1xf32>
    %6 = vector.shape_cast %5 : vector<32x1xf32> to vector<32x1xf32>
    %7 = vector.broadcast %6 : vector<32x1xf32> to vector<32x128xf32>
    %8 = vector.extract_strided_slice %1 {offsets = [0, 2], sizes = [32, 1], strides = [1, 1]} : vector<32x3xf32> to vector<32x1xf32>
    %9 = vector.shape_cast %8 : vector<32x1xf32> to vector<32x1xf32>
    %10 = vector.broadcast %9 : vector<32x1xf32> to vector<32x128xf32>
    %c0_3 = arith.constant 0 : index
    %c0_4 = arith.constant 0 : index
    %11 = vector.load %arg4[%c0_3, %c0_4] : memref<32x1xf32, #tpu.memory_space<vmem>>, vector<32x1xf32>
    %12 = vector.shape_cast %11 : vector<32x1xf32> to vector<32x1xf32>
    %13 = vector.broadcast %12 : vector<32x1xf32> to vector<32x128xf32>
    %c0_5 = arith.constant 0 : index
    %c0_6 = arith.constant 0 : index
    %14 = vector.load %arg6[%c0_5, %c0_6] : memref<32x1xf32, #tpu.memory_space<vmem>>, vector<32x1xf32>
    %15 = vector.shape_cast %14 : vector<32x1xf32> to vector<32x1xf32>
    %16 = vector.broadcast %15 : vector<32x1xf32> to vector<32x128xf32>
    %cst = arith.constant -3.000000e+38 : f32
    %17 = vector.broadcast %cst : f32 to vector<32x128xf32>
    %c0_7 = arith.constant 0 : index
    %c0_8 = arith.constant 0 : index
    %c0_9 = arith.constant 0 : index
    %18 = vector.load %arg1[%c0_7, %c0_8, %c0_9] : memref<10x3x128xbf16, #tpu.memory_space<vmem>>, vector<1x3x128xbf16>
    %19 = vector.shape_cast %18 : vector<1x3x128xbf16> to vector<3x128xbf16>
    %20 = arith.extf %19 : vector<3x128xbf16> to vector<3x128xf32>
    %21 = vector.extract_strided_slice %20 {offsets = [0, 0], sizes = [1, 128], strides = [1, 1]} : vector<3x128xf32> to vector<1x128xf32>
    %22 = vector.broadcast %21 : vector<1x128xf32> to vector<32x128xf32>
    %23 = arith.mulf %4, %22 : vector<32x128xf32>
    %24 = arith.addf %13, %23 : vector<32x128xf32>
    %25 = vector.extract_strided_slice %20 {offsets = [1, 0], sizes = [1, 128], strides = [1, 1]} : vector<3x128xf32> to vector<1x128xf32>
    %26 = vector.broadcast %25 : vector<1x128xf32> to vector<32x128xf32>
    %27 = arith.mulf %7, %26 : vector<32x128xf32>
    %28 = arith.addf %24, %27 : vector<32x128xf32>
    %29 = vector.extract_strided_slice %20 {offsets = [2, 0], sizes = [1, 128], strides = [1, 1]} : vector<3x128xf32> to vector<1x128xf32>
    %30 = vector.broadcast %29 : vector<1x128xf32> to vector<32x128xf32>
    %31 = arith.mulf %10, %30 : vector<32x128xf32>
    %32 = arith.addf %28, %31 : vector<32x128xf32>
    %cst_10 = arith.constant 0.000000e+00 : f32
    %33 = vector.broadcast %cst_10 : f32 to vector<32x128xf32>
    %34 = arith.maximumf %32, %33 : vector<32x128xf32>
    %cst_11 = arith.constant dense<0.000000e+00> : vector<32x128xf32>
    %35 = tpu.matmul %0, %34, %cst_11 {dimension_numbers = #tpu.dot_dimension_numbers<[1], [0], [0], [1], [0, 0, 1, 1], [], []>} : vector<32x32xf32>, vector<32x128xf32>, vector<32x128xf32> -> vector<32x128xf32>
    %36 = arith.addf %35, %16 : vector<32x128xf32>
    %c0_12 = arith.constant 0 : index
    %c0_13 = arith.constant 0 : index
    %37 = vector.load %arg2[%c0_12, %c0_13] : memref<10x128xf32, #tpu.memory_space<vmem>>, vector<1x128xf32>
    %38 = vector.broadcast %37 : vector<1x128xf32> to vector<32x128xf32>
    %39 = arith.addf %36, %38 : vector<32x128xf32>
    %40 = arith.maximumf %17, %39 : vector<32x128xf32>
    %c1 = arith.constant 1 : index
    %c0_14 = arith.constant 0 : index
    %c0_15 = arith.constant 0 : index
    %41 = vector.load %arg1[%c1, %c0_14, %c0_15] : memref<10x3x128xbf16, #tpu.memory_space<vmem>>, vector<1x3x128xbf16>
    %42 = vector.shape_cast %41 : vector<1x3x128xbf16> to vector<3x128xbf16>
    %43 = arith.extf %42 : vector<3x128xbf16> to vector<3x128xf32>
    %44 = vector.extract_strided_slice %43 {offsets = [0, 0], sizes = [1, 128], strides = [1, 1]} : vector<3x128xf32> to vector<1x128xf32>
    %45 = vector.broadcast %44 : vector<1x128xf32> to vector<32x128xf32>
    %46 = arith.mulf %4, %45 : vector<32x128xf32>
    %47 = arith.addf %13, %46 : vector<32x128xf32>
    %48 = vector.extract_strided_slice %43 {offsets = [1, 0], sizes = [1, 128], strides = [1, 1]} : vector<3x128xf32> to vector<1x128xf32>
    %49 = vector.broadcast %48 : vector<1x128xf32> to vector<32x128xf32>
    %50 = arith.mulf %7, %49 : vector<32x128xf32>
    %51 = arith.addf %47, %50 : vector<32x128xf32>
    %52 = vector.extract_strided_slice %43 {offsets = [2, 0], sizes = [1, 128], strides = [1, 1]} : vector<3x128xf32> to vector<1x128xf32>
    %53 = vector.broadcast %52 : vector<1x128xf32> to vector<32x128xf32>
    %54 = arith.mulf %10, %53 : vector<32x128xf32>
    %55 = arith.addf %51, %54 : vector<32x128xf32>
    %cst_16 = arith.constant 0.000000e+00 : f32
    %56 = vector.broadcast %cst_16 : f32 to vector<32x128xf32>
    %57 = arith.maximumf %55, %56 : vector<32x128xf32>
    %cst_17 = arith.constant dense<0.000000e+00> : vector<32x128xf32>
    %58 = tpu.matmul %0, %57, %cst_17 {dimension_numbers = #tpu.dot_dimension_numbers<[1], [0], [0], [1], [0, 0, 1, 1], [], []>} : vector<32x32xf32>, vector<32x128xf32>, vector<32x128xf32> -> vector<32x128xf32>
    %59 = arith.addf %58, %16 : vector<32x128xf32>
    %c1_18 = arith.constant 1 : index
    %c0_19 = arith.constant 0 : index
    %60 = vector.load %arg2[%c1_18, %c0_19] : memref<10x128xf32, #tpu.memory_space<vmem>>, vector<1x128xf32>
    %61 = vector.broadcast %60 : vector<1x128xf32> to vector<32x128xf32>
    %62 = arith.addf %59, %61 : vector<32x128xf32>
    %63 = arith.maximumf %40, %62 : vector<32x128xf32>
    %c2 = arith.constant 2 : index
    %c0_20 = arith.constant 0 : index
    %c0_21 = arith.constant 0 : index
    %64 = vector.load %arg1[%c2, %c0_20, %c0_21] : memref<10x3x128xbf16, #tpu.memory_space<vmem>>, vector<1x3x128xbf16>
    %65 = vector.shape_cast %64 : vector<1x3x128xbf16> to vector<3x128xbf16>
    %66 = arith.extf %65 : vector<3x128xbf16> to vector<3x128xf32>
    %67 = vector.extract_strided_slice %66 {offsets = [0, 0], sizes = [1, 128], strides = [1, 1]} : vector<3x128xf32> to vector<1x128xf32>
    %68 = vector.broadcast %67 : vector<1x128xf32> to vector<32x128xf32>
    %69 = arith.mulf %4, %68 : vector<32x128xf32>
    %70 = arith.addf %13, %69 : vector<32x128xf32>
    %71 = vector.extract_strided_slice %66 {offsets = [1, 0], sizes = [1, 128], strides = [1, 1]} : vector<3x128xf32> to vector<1x128xf32>
    %72 = vector.broadcast %71 : vector<1x128xf32> to vector<32x128xf32>
    %73 = arith.mulf %7, %72 : vector<32x128xf32>
    %74 = arith.addf %70, %73 : vector<32x128xf32>
    %75 = vector.extract_strided_slice %66 {offsets = [2, 0], sizes = [1, 128], strides = [1, 1]} : vector<3x128xf32> to vector<1x128xf32>
    %76 = vector.broadcast %75 : vector<1x128xf32> to vector<32x128xf32>
    %77 = arith.mulf %10, %76 : vector<32x128xf32>
    %78 = arith.addf %74, %77 : vector<32x128xf32>
    %cst_22 = arith.constant 0.000000e+00 : f32
    %79 = vector.broadcast %cst_22 : f32 to vector<32x128xf32>
    %80 = arith.maximumf %78, %79 : vector<32x128xf32>
    %cst_23 = arith.constant dense<0.000000e+00> : vector<32x128xf32>
    %81 = tpu.matmul %0, %80, %cst_23 {dimension_numbers = #tpu.dot_dimension_numbers<[1], [0], [0], [1], [0, 0, 1, 1], [], []>} : vector<32x32xf32>, vector<32x128xf32>, vector<32x128xf32> -> vector<32x128xf32>
    %82 = arith.addf %81, %16 : vector<32x128xf32>
    %c2_24 = arith.constant 2 : index
    %c0_25 = arith.constant 0 : index
    %83 = vector.load %arg2[%c2_24, %c0_25] : memref<10x128xf32, #tpu.memory_space<vmem>>, vector<1x128xf32>
    %84 = vector.broadcast %83 : vector<1x128xf32> to vector<32x128xf32>
    %85 = arith.addf %82, %84 : vector<32x128xf32>
    %86 = arith.maximumf %63, %85 : vector<32x128xf32>
    %c3 = arith.constant 3 : index
    %c0_26 = arith.constant 0 : index
    %c0_27 = arith.constant 0 : index
    %87 = vector.load %arg1[%c3, %c0_26, %c0_27] : memref<10x3x128xbf16, #tpu.memory_space<vmem>>, vector<1x3x128xbf16>
    %88 = vector.shape_cast %87 : vector<1x3x128xbf16> to vector<3x128xbf16>
    %89 = arith.extf %88 : vector<3x128xbf16> to vector<3x128xf32>
    %90 = vector.extract_strided_slice %89 {offsets = [0, 0], sizes = [1, 128], strides = [1, 1]} : vector<3x128xf32> to vector<1x128xf32>
    %91 = vector.broadcast %90 : vector<1x128xf32> to vector<32x128xf32>
    %92 = arith.mulf %4, %91 : vector<32x128xf32>
    %93 = arith.addf %13, %92 : vector<32x128xf32>
    %94 = vector.extract_strided_slice %89 {offsets = [1, 0], sizes = [1, 128], strides = [1, 1]} : vector<3x128xf32> to vector<1x128xf32>
    %95 = vector.broadcast %94 : vector<1x128xf32> to vector<32x128xf32>
    %96 = arith.mulf %7, %95 : vector<32x128xf32>
    %97 = arith.addf %93, %96 : vector<32x128xf32>
    %98 = vector.extract_strided_slice %89 {offsets = [2, 0], sizes = [1, 128], strides = [1, 1]} : vector<3x128xf32> to vector<1x128xf32>
    %99 = vector.broadcast %98 : vector<1x128xf32> to vector<32x128xf32>
    %100 = arith.mulf %10, %99 : vector<32x128xf32>
    %101 = arith.addf %97, %100 : vector<32x128xf32>
    %cst_28 = arith.constant 0.000000e+00 : f32
    %102 = vector.broadcast %cst_28 : f32 to vector<32x128xf32>
    %103 = arith.maximumf %101, %102 : vector<32x128xf32>
    %cst_29 = arith.constant dense<0.000000e+00> : vector<32x128xf32>
    %104 = tpu.matmul %0, %103, %cst_29 {dimension_numbers = #tpu.dot_dimension_numbers<[1], [0], [0], [1], [0, 0, 1, 1], [], []>} : vector<32x32xf32>, vector<32x128xf32>, vector<32x128xf32> -> vector<32x128xf32>
    %105 = arith.addf %104, %16 : vector<32x128xf32>
    %c3_30 = arith.constant 3 : index
    %c0_31 = arith.constant 0 : index
    %106 = vector.load %arg2[%c3_30, %c0_31] : memref<10x128xf32, #tpu.memory_space<vmem>>, vector<1x128xf32>
    %107 = vector.broadcast %106 : vector<1x128xf32> to vector<32x128xf32>
    %108 = arith.addf %105, %107 : vector<32x128xf32>
    %109 = arith.maximumf %86, %108 : vector<32x128xf32>
    %c4 = arith.constant 4 : index
    %c0_32 = arith.constant 0 : index
    %c0_33 = arith.constant 0 : index
    %110 = vector.load %arg1[%c4, %c0_32, %c0_33] : memref<10x3x128xbf16, #tpu.memory_space<vmem>>, vector<1x3x128xbf16>
    %111 = vector.shape_cast %110 : vector<1x3x128xbf16> to vector<3x128xbf16>
    %112 = arith.extf %111 : vector<3x128xbf16> to vector<3x128xf32>
    %113 = vector.extract_strided_slice %112 {offsets = [0, 0], sizes = [1, 128], strides = [1, 1]} : vector<3x128xf32> to vector<1x128xf32>
    %114 = vector.broadcast %113 : vector<1x128xf32> to vector<32x128xf32>
    %115 = arith.mulf %4, %114 : vector<32x128xf32>
    %116 = arith.addf %13, %115 : vector<32x128xf32>
    %117 = vector.extract_strided_slice %112 {offsets = [1, 0], sizes = [1, 128], strides = [1, 1]} : vector<3x128xf32> to vector<1x128xf32>
    %118 = vector.broadcast %117 : vector<1x128xf32> to vector<32x128xf32>
    %119 = arith.mulf %7, %118 : vector<32x128xf32>
    %120 = arith.addf %116, %119 : vector<32x128xf32>
    %121 = vector.extract_strided_slice %112 {offsets = [2, 0], sizes = [1, 128], strides = [1, 1]} : vector<3x128xf32> to vector<1x128xf32>
    %122 = vector.broadcast %121 : vector<1x128xf32> to vector<32x128xf32>
    %123 = arith.mulf %10, %122 : vector<32x128xf32>
    %124 = arith.addf %120, %123 : vector<32x128xf32>
    %cst_34 = arith.constant 0.000000e+00 : f32
    %125 = vector.broadcast %cst_34 : f32 to vector<32x128xf32>
    %126 = arith.maximumf %124, %125 : vector<32x128xf32>
    %cst_35 = arith.constant dense<0.000000e+00> : vector<32x128xf32>
    %127 = tpu.matmul %0, %126, %cst_35 {dimension_numbers = #tpu.dot_dimension_numbers<[1], [0], [0], [1], [0, 0, 1, 1], [], []>} : vector<32x32xf32>, vector<32x128xf32>, vector<32x128xf32> -> vector<32x128xf32>
    %128 = arith.addf %127, %16 : vector<32x128xf32>
    %c4_36 = arith.constant 4 : index
    %c0_37 = arith.constant 0 : index
    %129 = vector.load %arg2[%c4_36, %c0_37] : memref<10x128xf32, #tpu.memory_space<vmem>>, vector<1x128xf32>
    %130 = vector.broadcast %129 : vector<1x128xf32> to vector<32x128xf32>
    %131 = arith.addf %128, %130 : vector<32x128xf32>
    %132 = arith.maximumf %109, %131 : vector<32x128xf32>
    %c5 = arith.constant 5 : index
    %c0_38 = arith.constant 0 : index
    %c0_39 = arith.constant 0 : index
    %133 = vector.load %arg1[%c5, %c0_38, %c0_39] : memref<10x3x128xbf16, #tpu.memory_space<vmem>>, vector<1x3x128xbf16>
    %134 = vector.shape_cast %133 : vector<1x3x128xbf16> to vector<3x128xbf16>
    %135 = arith.extf %134 : vector<3x128xbf16> to vector<3x128xf32>
    %136 = vector.extract_strided_slice %135 {offsets = [0, 0], sizes = [1, 128], strides = [1, 1]} : vector<3x128xf32> to vector<1x128xf32>
    %137 = vector.broadcast %136 : vector<1x128xf32> to vector<32x128xf32>
    %138 = arith.mulf %4, %137 : vector<32x128xf32>
    %139 = arith.addf %13, %138 : vector<32x128xf32>
    %140 = vector.extract_strided_slice %135 {offsets = [1, 0], sizes = [1, 128], strides = [1, 1]} : vector<3x128xf32> to vector<1x128xf32>
    %141 = vector.broadcast %140 : vector<1x128xf32> to vector<32x128xf32>
    %142 = arith.mulf %7, %141 : vector<32x128xf32>
    %143 = arith.addf %139, %142 : vector<32x128xf32>
    %144 = vector.extract_strided_slice %135 {offsets = [2, 0], sizes = [1, 128], strides = [1, 1]} : vector<3x128xf32> to vector<1x128xf32>
    %145 = vector.broadcast %144 : vector<1x128xf32> to vector<32x128xf32>
    %146 = arith.mulf %10, %145 : vector<32x128xf32>
    %147 = arith.addf %143, %146 : vector<32x128xf32>
    %cst_40 = arith.constant 0.000000e+00 : f32
    %148 = vector.broadcast %cst_40 : f32 to vector<32x128xf32>
    %149 = arith.maximumf %147, %148 : vector<32x128xf32>
    %cst_41 = arith.constant dense<0.000000e+00> : vector<32x128xf32>
    %150 = tpu.matmul %0, %149, %cst_41 {dimension_numbers = #tpu.dot_dimension_numbers<[1], [0], [0], [1], [0, 0, 1, 1], [], []>} : vector<32x32xf32>, vector<32x128xf32>, vector<32x128xf32> -> vector<32x128xf32>
    %151 = arith.addf %150, %16 : vector<32x128xf32>
    %c5_42 = arith.constant 5 : index
    %c0_43 = arith.constant 0 : index
    %152 = vector.load %arg2[%c5_42, %c0_43] : memref<10x128xf32, #tpu.memory_space<vmem>>, vector<1x128xf32>
    %153 = vector.broadcast %152 : vector<1x128xf32> to vector<32x128xf32>
    %154 = arith.addf %151, %153 : vector<32x128xf32>
    %155 = arith.maximumf %132, %154 : vector<32x128xf32>
    %c6 = arith.constant 6 : index
    %c0_44 = arith.constant 0 : index
    %c0_45 = arith.constant 0 : index
    %156 = vector.load %arg1[%c6, %c0_44, %c0_45] : memref<10x3x128xbf16, #tpu.memory_space<vmem>>, vector<1x3x128xbf16>
    %157 = vector.shape_cast %156 : vector<1x3x128xbf16> to vector<3x128xbf16>
    %158 = arith.extf %157 : vector<3x128xbf16> to vector<3x128xf32>
    %159 = vector.extract_strided_slice %158 {offsets = [0, 0], sizes = [1, 128], strides = [1, 1]} : vector<3x128xf32> to vector<1x128xf32>
    %160 = vector.broadcast %159 : vector<1x128xf32> to vector<32x128xf32>
    %161 = arith.mulf %4, %160 : vector<32x128xf32>
    %162 = arith.addf %13, %161 : vector<32x128xf32>
    %163 = vector.extract_strided_slice %158 {offsets = [1, 0], sizes = [1, 128], strides = [1, 1]} : vector<3x128xf32> to vector<1x128xf32>
    %164 = vector.broadcast %163 : vector<1x128xf32> to vector<32x128xf32>
    %165 = arith.mulf %7, %164 : vector<32x128xf32>
    %166 = arith.addf %162, %165 : vector<32x128xf32>
    %167 = vector.extract_strided_slice %158 {offsets = [2, 0], sizes = [1, 128], strides = [1, 1]} : vector<3x128xf32> to vector<1x128xf32>
    %168 = vector.broadcast %167 : vector<1x128xf32> to vector<32x128xf32>
    %169 = arith.mulf %10, %168 : vector<32x128xf32>
    %170 = arith.addf %166, %169 : vector<32x128xf32>
    %cst_46 = arith.constant 0.000000e+00 : f32
    %171 = vector.broadcast %cst_46 : f32 to vector<32x128xf32>
    %172 = arith.maximumf %170, %171 : vector<32x128xf32>
    %cst_47 = arith.constant dense<0.000000e+00> : vector<32x128xf32>
    %173 = tpu.matmul %0, %172, %cst_47 {dimension_numbers = #tpu.dot_dimension_numbers<[1], [0], [0], [1], [0, 0, 1, 1], [], []>} : vector<32x32xf32>, vector<32x128xf32>, vector<32x128xf32> -> vector<32x128xf32>
    %174 = arith.addf %173, %16 : vector<32x128xf32>
    %c6_48 = arith.constant 6 : index
    %c0_49 = arith.constant 0 : index
    %175 = vector.load %arg2[%c6_48, %c0_49] : memref<10x128xf32, #tpu.memory_space<vmem>>, vector<1x128xf32>
    %176 = vector.broadcast %175 : vector<1x128xf32> to vector<32x128xf32>
    %177 = arith.addf %174, %176 : vector<32x128xf32>
    %178 = arith.maximumf %155, %177 : vector<32x128xf32>
    %c7 = arith.constant 7 : index
    %c0_50 = arith.constant 0 : index
    %c0_51 = arith.constant 0 : index
    %179 = vector.load %arg1[%c7, %c0_50, %c0_51] : memref<10x3x128xbf16, #tpu.memory_space<vmem>>, vector<1x3x128xbf16>
    %180 = vector.shape_cast %179 : vector<1x3x128xbf16> to vector<3x128xbf16>
    %181 = arith.extf %180 : vector<3x128xbf16> to vector<3x128xf32>
    %182 = vector.extract_strided_slice %181 {offsets = [0, 0], sizes = [1, 128], strides = [1, 1]} : vector<3x128xf32> to vector<1x128xf32>
    %183 = vector.broadcast %182 : vector<1x128xf32> to vector<32x128xf32>
    %184 = arith.mulf %4, %183 : vector<32x128xf32>
    %185 = arith.addf %13, %184 : vector<32x128xf32>
    %186 = vector.extract_strided_slice %181 {offsets = [1, 0], sizes = [1, 128], strides = [1, 1]} : vector<3x128xf32> to vector<1x128xf32>
    %187 = vector.broadcast %186 : vector<1x128xf32> to vector<32x128xf32>
    %188 = arith.mulf %7, %187 : vector<32x128xf32>
    %189 = arith.addf %185, %188 : vector<32x128xf32>
    %190 = vector.extract_strided_slice %181 {offsets = [2, 0], sizes = [1, 128], strides = [1, 1]} : vector<3x128xf32> to vector<1x128xf32>
    %191 = vector.broadcast %190 : vector<1x128xf32> to vector<32x128xf32>
    %192 = arith.mulf %10, %191 : vector<32x128xf32>
    %193 = arith.addf %189, %192 : vector<32x128xf32>
    %cst_52 = arith.constant 0.000000e+00 : f32
    %194 = vector.broadcast %cst_52 : f32 to vector<32x128xf32>
    %195 = arith.maximumf %193, %194 : vector<32x128xf32>
    %cst_53 = arith.constant dense<0.000000e+00> : vector<32x128xf32>
    %196 = tpu.matmul %0, %195, %cst_53 {dimension_numbers = #tpu.dot_dimension_numbers<[1], [0], [0], [1], [0, 0, 1, 1], [], []>} : vector<32x32xf32>, vector<32x128xf32>, vector<32x128xf32> -> vector<32x128xf32>
    %197 = arith.addf %196, %16 : vector<32x128xf32>
    %c7_54 = arith.constant 7 : index
    %c0_55 = arith.constant 0 : index
    %198 = vector.load %arg2[%c7_54, %c0_55] : memref<10x128xf32, #tpu.memory_space<vmem>>, vector<1x128xf32>
    %199 = vector.broadcast %198 : vector<1x128xf32> to vector<32x128xf32>
    %200 = arith.addf %197, %199 : vector<32x128xf32>
    %201 = arith.maximumf %178, %200 : vector<32x128xf32>
    %c8 = arith.constant 8 : index
    %c0_56 = arith.constant 0 : index
    %c0_57 = arith.constant 0 : index
    %202 = vector.load %arg1[%c8, %c0_56, %c0_57] : memref<10x3x128xbf16, #tpu.memory_space<vmem>>, vector<1x3x128xbf16>
    %203 = vector.shape_cast %202 : vector<1x3x128xbf16> to vector<3x128xbf16>
    %204 = arith.extf %203 : vector<3x128xbf16> to vector<3x128xf32>
    %205 = vector.extract_strided_slice %204 {offsets = [0, 0], sizes = [1, 128], strides = [1, 1]} : vector<3x128xf32> to vector<1x128xf32>
    %206 = vector.broadcast %205 : vector<1x128xf32> to vector<32x128xf32>
    %207 = arith.mulf %4, %206 : vector<32x128xf32>
    %208 = arith.addf %13, %207 : vector<32x128xf32>
    %209 = vector.extract_strided_slice %204 {offsets = [1, 0], sizes = [1, 128], strides = [1, 1]} : vector<3x128xf32> to vector<1x128xf32>
    %210 = vector.broadcast %209 : vector<1x128xf32> to vector<32x128xf32>
    %211 = arith.mulf %7, %210 : vector<32x128xf32>
    %212 = arith.addf %208, %211 : vector<32x128xf32>
    %213 = vector.extract_strided_slice %204 {offsets = [2, 0], sizes = [1, 128], strides = [1, 1]} : vector<3x128xf32> to vector<1x128xf32>
    %214 = vector.broadcast %213 : vector<1x128xf32> to vector<32x128xf32>
    %215 = arith.mulf %10, %214 : vector<32x128xf32>
    %216 = arith.addf %212, %215 : vector<32x128xf32>
    %cst_58 = arith.constant 0.000000e+00 : f32
    %217 = vector.broadcast %cst_58 : f32 to vector<32x128xf32>
    %218 = arith.maximumf %216, %217 : vector<32x128xf32>
    %cst_59 = arith.constant dense<0.000000e+00> : vector<32x128xf32>
    %219 = tpu.matmul %0, %218, %cst_59 {dimension_numbers = #tpu.dot_dimension_numbers<[1], [0], [0], [1], [0, 0, 1, 1], [], []>} : vector<32x32xf32>, vector<32x128xf32>, vector<32x128xf32> -> vector<32x128xf32>
    %220 = arith.addf %219, %16 : vector<32x128xf32>
    %c8_60 = arith.constant 8 : index
    %c0_61 = arith.constant 0 : index
    %221 = vector.load %arg2[%c8_60, %c0_61] : memref<10x128xf32, #tpu.memory_space<vmem>>, vector<1x128xf32>
    %222 = vector.broadcast %221 : vector<1x128xf32> to vector<32x128xf32>
    %223 = arith.addf %220, %222 : vector<32x128xf32>
    %224 = arith.maximumf %201, %223 : vector<32x128xf32>
    %c9 = arith.constant 9 : index
    %c0_62 = arith.constant 0 : index
    %c0_63 = arith.constant 0 : index
    %225 = vector.load %arg1[%c9, %c0_62, %c0_63] : memref<10x3x128xbf16, #tpu.memory_space<vmem>>, vector<1x3x128xbf16>
    %226 = vector.shape_cast %225 : vector<1x3x128xbf16> to vector<3x128xbf16>
    %227 = arith.extf %226 : vector<3x128xbf16> to vector<3x128xf32>
    %228 = vector.extract_strided_slice %227 {offsets = [0, 0], sizes = [1, 128], strides = [1, 1]} : vector<3x128xf32> to vector<1x128xf32>
    %229 = vector.broadcast %228 : vector<1x128xf32> to vector<32x128xf32>
    %230 = arith.mulf %4, %229 : vector<32x128xf32>
    %231 = arith.addf %13, %230 : vector<32x128xf32>
    %232 = vector.extract_strided_slice %227 {offsets = [1, 0], sizes = [1, 128], strides = [1, 1]} : vector<3x128xf32> to vector<1x128xf32>
    %233 = vector.broadcast %232 : vector<1x128xf32> to vector<32x128xf32>
    %234 = arith.mulf %7, %233 : vector<32x128xf32>
    %235 = arith.addf %231, %234 : vector<32x128xf32>
    %236 = vector.extract_strided_slice %227 {offsets = [2, 0], sizes = [1, 128], strides = [1, 1]} : vector<3x128xf32> to vector<1x128xf32>
    %237 = vector.broadcast %236 : vector<1x128xf32> to vector<32x128xf32>
    %238 = arith.mulf %10, %237 : vector<32x128xf32>
    %239 = arith.addf %235, %238 : vector<32x128xf32>
    %cst_64 = arith.constant 0.000000e+00 : f32
    %240 = vector.broadcast %cst_64 : f32 to vector<32x128xf32>
    %241 = arith.maximumf %239, %240 : vector<32x128xf32>
    %cst_65 = arith.constant dense<0.000000e+00> : vector<32x128xf32>
    %242 = tpu.matmul %0, %241, %cst_65 {dimension_numbers = #tpu.dot_dimension_numbers<[1], [0], [0], [1], [0, 0, 1, 1], [], []>} : vector<32x32xf32>, vector<32x128xf32>, vector<32x128xf32> -> vector<32x128xf32>
    %243 = arith.addf %242, %16 : vector<32x128xf32>
    %c9_66 = arith.constant 9 : index
    %c0_67 = arith.constant 0 : index
    %244 = vector.load %arg2[%c9_66, %c0_67] : memref<10x128xf32, #tpu.memory_space<vmem>>, vector<1x128xf32>
    %245 = vector.broadcast %244 : vector<1x128xf32> to vector<32x128xf32>
    %246 = arith.addf %243, %245 : vector<32x128xf32>
    %247 = arith.maximumf %224, %246 : vector<32x128xf32>
    %c0_68 = arith.constant 0 : index
    %c0_69 = arith.constant 0 : index
    %248 = vector.load %arg2[%c0_68, %c0_69] : memref<10x128xf32, #tpu.memory_space<vmem>>, vector<10x128xf32>
    %cst_70 = arith.constant dense<0xFF800000> : vector<128xf32>
    %249 = vector.multi_reduction <maximumf>, %248, %cst_70 [0] : vector<10x128xf32> to vector<128xf32>
    %250 = vector.shape_cast %249 : vector<128xf32> to vector<1x128xf32>
    %cst_71 = arith.constant -1.000000e+00 : f32
    %251 = vector.broadcast %cst_71 : f32 to vector<1x128xf32>
    %252 = arith.cmpf ogt, %250, %251 : vector<1x128xf32>
    %cst_72 = arith.constant 0.000000e+00 : f32
    %253 = vector.shape_cast %252 : vector<1x128xi1> to vector<1x128xi1>
    %254 = vector.broadcast %253 : vector<1x128xi1> to vector<32x128xi1>
    %255 = vector.broadcast %cst_72 : f32 to vector<32x128xf32>
    %256 = arith.select %254, %247, %255 : vector<32x128xi1>, vector<32x128xf32>
    %c0_73 = arith.constant 0 : index
    %c0_74 = arith.constant 0 : index
    %257 = vector.load %arg7[%c0_73, %c0_74] : memref<32x128xf32, #tpu.memory_space<vmem>>, vector<32x128xf32>
    tpu.vector_store %arg7[%c0_73, %c0_74], %256 {strides = array<i32>} : memref<32x128xf32, #tpu.memory_space<vmem>>, vector<32x128xf32>,
    return
  }
  func.func @transform_0(%arg0: i32) -> (i32, i32, i32) {
    %c0_i32 = arith.constant 0 : i32
    %c0_i32_0 = arith.constant 0 : i32
    %c0_i32_1 = arith.constant 0 : i32
    return %c0_i32, %c0_i32_0, %arg0 : i32, i32, i32
  }
  func.func @transform_1(%arg0: i32) -> (i32, i32) {
    %c0_i32 = arith.constant 0 : i32
    %c0_i32_0 = arith.constant 0 : i32
    return %c0_i32, %arg0 : i32, i32
  }
  func.func @transform_2(%arg0: i32) -> (i32, i32) {
    %c0_i32 = arith.constant 0 : i32
    %c0_i32_0 = arith.constant 0 : i32
    %c0_i32_1 = arith.constant 0 : i32
    return %c0_i32, %c0_i32_0 : i32, i32
  }
  func.func @transform_3(%arg0: i32) -> (i32, i32) {
    %c0_i32 = arith.constant 0 : i32
    %c0_i32_0 = arith.constant 0 : i32
    %c0_i32_1 = arith.constant 0 : i32
    return %c0_i32, %c0_i32_0 : i32, i32
  }
  func.func @transform_4(%arg0: i32) -> (i32, i32) {
    %c0_i32 = arith.constant 0 : i32
    %c0_i32_0 = arith.constant 0 : i32
    %c0_i32_1 = arith.constant 0 : i32
    return %c0_i32, %c0_i32_0 : i32, i32
  }
  func.func @transform_5(%arg0: i32) -> (i32, i32) {
    %c0_i32 = arith.constant 0 : i32
    %c0_i32_0 = arith.constant 0 : i32
    %c0_i32_1 = arith.constant 0 : i32
    return %c0_i32, %c0_i32_0 : i32, i32
  }
  func.func @transform_6(%arg0: i32) -> (i32, i32) {
    %c0_i32 = arith.constant 0 : i32
    %c0_i32_0 = arith.constant 0 : i32
    return %c0_i32, %arg0 : i32, i32
  }
}

</mosaic_0001>

<llo_original>
// kernel: tpu_custom_call.1
$region0: #{tpu_custom_call.1}
  #allocation0 [shape = 'u32[]', space=smem, size = 0x4, offset = 0x4, fixed_abs, tag = 'smem constant byte address 0x4 - core index']
  #allocation1 [shape = 'u32[144,128]{1,0:T(1,128)}', space=vmem, size = 0x12000, scoped, tag = 'internal scratch']
  %s0 = inlined_call_operand.vmem [shape: bf16[10,3,128], index: 0, kind: input, shape index: {}]
  %s1 = inlined_call_operand.vmem [shape: f32[10,128], index: 1, kind: input, shape index: {}]
  %s2 = inlined_call_operand.vmem [shape: f32[32,3], index: 2, kind: input, shape index: {}]
  %s3 = inlined_call_operand.vmem [shape: f32[32,1], index: 3, kind: input, shape index: {}]
  %s4 = inlined_call_operand.vmem [shape: f32[32,32], index: 4, kind: input, shape index: {}]
  %s5 = inlined_call_operand.vmem [shape: f32[32,1], index: 5, kind: input, shape index: {}]
  %s6 = inlined_call_operand.hbm [shape: f32[32,128], index: 6, kind: output, shape index: {}]
  %s7 = sld [smem:[#allocation0]]
  $region34: #{tpu_custom_call.1} parent=0
    _
  %s9 = ssub.s32 1, %s7
  %s10 = scalar_select 0, %s9, %s7
  $region1: #{tpu_custom_call.1} parent=0
    #allocation2 [shape = 'u8[16384]{0}', space=vmem, size = 0x4000, scoped, tag = 'output window, operand 0, single buffered']
    #allocation3 [shape = 's32[1]{0}', space=sflag, size = 0x4, scoped, tag = 'scoped memory for tpu_custom_call.1']
    %11 = vsyncpa [#allocation3], 0
    // Predicated region
    $region2: #{tpu_custom_call.1} parent=1 // pred_check
      _
    $region3: #{tpu_custom_call.1} parent=1 // pred_check_branch
      %13 = sbr.rel (0) target = $region5
    $region4: #{tpu_custom_call.1} parent=1 // pred_region
      _
    $region5: #{tpu_custom_call.1} parent=1 // pred_fallthru
      _
    // Predicated region
    $region6: #{tpu_custom_call.1} parent=1 // pred_check
      _
    $region7: #{tpu_custom_call.1} parent=1 // pred_check_branch
      %15 = sbr.rel (0) target = $region9
    $region8: #{tpu_custom_call.1} parent=1 // pred_region
      _
    $region9: #{tpu_custom_call.1} parent=1 // pred_fallthru
      _
    // Predicated region
    $region10: #{tpu_custom_call.1} parent=1 // pred_check
      _
    $region11: #{tpu_custom_call.1} parent=1 // pred_check_branch
      %17 = sbr.rel (0) target = $region13
    $region12: #{tpu_custom_call.1} parent=1 // pred_region
      _
    $region13: #{tpu_custom_call.1} parent=1 // pred_fallthru
      _
    // Predicated region
    $region14: #{tpu_custom_call.1} parent=1 // pred_check
      _
    $region15: #{tpu_custom_call.1} parent=1 // pred_check_branch
      %19 = sbr.rel (0) target = $region17
    $region16: #{tpu_custom_call.1} parent=1 // pred_region
      _
    $region17: #{tpu_custom_call.1} parent=1 // pred_fallthru
      _
    // Predicated region
    $region18: #{tpu_custom_call.1} parent=1 // pred_check
      _
    $region19: #{tpu_custom_call.1} parent=1 // pred_check_branch
      %21 = sbr.rel (0) target = $region21
    $region20: #{tpu_custom_call.1} parent=1 // pred_region
      _
    $region21: #{tpu_custom_call.1} parent=1 // pred_fallthru
      _
    // Predicated region
    $region22: #{tpu_custom_call.1} parent=1 // pred_check
      _
    $region23: #{tpu_custom_call.1} parent=1 // pred_check_branch
      %23 = sbr.rel (0) target = $region25
    $region24: #{tpu_custom_call.1} parent=1 // pred_region
      _
    $region25: #{tpu_custom_call.1} parent=1 // pred_fallthru
      _
    %v24 = vld [vmem:[%s4] sm:$0xff]
    %v25 = vld [vmem:[%s4 + $0x8] sm:$0xff]
    %v26 = vld [vmem:[%s4 + $0x10] sm:$0xff]
    %v27 = vld [vmem:[%s4 + $0x18] sm:$0xff]
    %v28 = vld [vmem:[%s2] sm:$0xff]
    %v29 = vld [vmem:[%s2 + $0x8] sm:$0xff]
    %v30 = vld [vmem:[%s2 + $0x10] sm:$0xff]
    %v31 = vld [vmem:[%s2 + $0x18] sm:$0xff]
    %33 = vset.pattern.permute.xlu0 0
    %34 = vperm.xlu0 %33, %v28
    %v35 = vpop.permute.xlu0 %34
    %38 = vset.pattern.permute.xlu0 0
    %39 = vperm.xlu0 %38, %v29
    %v40 = vpop.permute.xlu0 %39
    %43 = vset.pattern.permute.xlu0 0
    %44 = vperm.xlu0 %43, %v30
    %v45 = vpop.permute.xlu0 %44
    %48 = vset.pattern.permute.xlu0 0
    %49 = vperm.xlu0 %48, %v31
    %v50 = vpop.permute.xlu0 %49
    %52 = vset.pattern.permute.xlu0 1
    %53 = vperm.xlu0 %52, %v28
    %v54 = vpop.permute.xlu0 %53
    %56 = vset.pattern.permute.xlu0 1
    %57 = vperm.xlu0 %56, %v29
    %v58 = vpop.permute.xlu0 %57
    %60 = vset.pattern.permute.xlu0 1
    %61 = vperm.xlu0 %60, %v30
    %v62 = vpop.permute.xlu0 %61
    %64 = vset.pattern.permute.xlu0 1
    %65 = vperm.xlu0 %64, %v31
    %v66 = vpop.permute.xlu0 %65
    %68 = vset.pattern.permute.xlu0 2
    %69 = vperm.xlu0 %68, %v28
    %v70 = vpop.permute.xlu0 %69
    %72 = vset.pattern.permute.xlu0 2
    %73 = vperm.xlu0 %72, %v29
    %v74 = vpop.permute.xlu0 %73
    %76 = vset.pattern.permute.xlu0 2
    %77 = vperm.xlu0 %76, %v30
    %v78 = vpop.permute.xlu0 %77
    %80 = vset.pattern.permute.xlu0 2
    %81 = vperm.xlu0 %80, %v31
    %v82 = vpop.permute.xlu0 %81
    %v84 = vld [vmem:[%s3] sm:$0xff]
    %v85 = vld [vmem:[%s3 + $0x8] sm:$0xff]
    %v86 = vld [vmem:[%s3 + $0x10] sm:$0xff]
    %v87 = vld [vmem:[%s3 + $0x18] sm:$0xff]
    %89 = vset.pattern.permute.xlu0 0
    %90 = vperm.xlu0 %89, %v84
    %v91 = vpop.permute.xlu0 %90
    %94 = vset.pattern.permute.xlu0 0
    %95 = vperm.xlu0 %94, %v85
    %v96 = vpop.permute.xlu0 %95
    %99 = vset.pattern.permute.xlu0 0
    %100 = vperm.xlu0 %99, %v86
    %v101 = vpop.permute.xlu0 %100
    %104 = vset.pattern.permute.xlu0 0
    %105 = vperm.xlu0 %104, %v87
    %v106 = vpop.permute.xlu0 %105
    %v108 = vld [vmem:[%s5] sm:$0xff]
    %v109 = vld [vmem:[%s5 + $0x8] sm:$0xff]
    %v110 = vld [vmem:[%s5 + $0x10] sm:$0xff]
    %v111 = vld [vmem:[%s5 + $0x18] sm:$0xff]
    %113 = vset.pattern.permute.xlu0 0
    %114 = vperm.xlu0 %113, %v108
    %v115 = vpop.permute.xlu0 %114
    %118 = vset.pattern.permute.xlu0 0
    %119 = vperm.xlu0 %118, %v109
    %v120 = vpop.permute.xlu0 %119
    %123 = vset.pattern.permute.xlu0 0
    %124 = vperm.xlu0 %123, %v110
    %v125 = vpop.permute.xlu0 %124
    %128 = vset.pattern.permute.xlu0 0
    %129 = vperm.xlu0 %128, %v111
    %v130 = vpop.permute.xlu0 %129
    %v132 = vld [vmem:[%s0] sm:$0x3]
    %v133 = vunpack.c.l.bf16 %v132
    %v134 = vlaneseq
    %v135 = vshrl.u32 %v134, 7
    %v136 = vsub.s32 0, %v135
    %v137 = vrot.slane %v133, %v136
    %v138 = vmul.f32 %v35, %v137
    %v139 = vmul.f32 %v40, %v137
    %v140 = vmul.f32 %v45, %v137
    %v141 = vmul.f32 %v50, %v137
    %v142 = vadd.f32 %v91, %v138
    %v143 = vadd.f32 %v96, %v139
    %v144 = vadd.f32 %v101, %v140
    %v145 = vadd.f32 %v106, %v141
    %v146 = vlaneseq
    %v147 = vshrl.u32 %v146, 7
    %v148 = vsub.s32 1, %v147
    %v149 = vrot.slane %v133, %v148
    %v150 = vmul.f32 %v54, %v149
    %v151 = vmul.f32 %v58, %v149
    %v152 = vmul.f32 %v62, %v149
    %v153 = vmul.f32 %v66, %v149
    %v154 = vadd.f32 %v142, %v150
    %v155 = vadd.f32 %v143, %v151
    %v156 = vadd.f32 %v144, %v152
    %v157 = vadd.f32 %v145, %v153
    %v158 = vlaneseq
    %v159 = vshrl.u32 %v158, 7
    %v160 = vsub.s32 2, %v159
    %v161 = vrot.slane %v133, %v160
    %v162 = vmul.f32 %v70, %v161
    %v163 = vmul.f32 %v74, %v161
    %v164 = vmul.f32 %v78, %v161
    %v165 = vmul.f32 %v82, %v161
    %v166 = vadd.f32 %v154, %v162
    %v167 = vadd.f32 %v155, %v163
    %v168 = vadd.f32 %v156, %v164
    %v169 = vadd.f32 %v157, %v165
    %v170 = vmax.f32 %v166, 0.0
    %v171 = vmax.f32 %v167, 0.0
    %v172 = vmax.f32 %v168, 0.0
    %v173 = vmax.f32 %v169, 0.0
    %vm174 = vcmask 261120
    %v176 = vsel %vm174, %v24, 0
    %v179 = vsel %vm174, %v25, 0
    %v182 = vsel %vm174, %v26, 0
    %v185 = vsel %vm174, %v27, 0
    %187 = vmatprep.subr.mxu0 0.0
    %188 = vmatpush1.msra.mxu0 %v170
    %189 = vmatprep.subr.mxu0 0.0
    %190 = vmatpush1.msra.mxu0 %v171
    %191 = vmatprep.subr.mxu0 0.0
    %192 = vmatpush1.msra.mxu0 %v172
    %193 = vmatprep.subr.mxu0 0.0
    %194 = vmatpush1.msra.mxu0 %v173
    %195 = vmatprep.subr.mxu0 0.0
    %196 = vmatpush1.msra.mxu0 0.0
    %197 = vmatprep.subr.mxu0 0.0
    %198 = vmatpush1.msra.mxu0 0.0
    %199 = vmatprep.subr.mxu0 0.0
    %200 = vmatpush1.msra.mxu0 0.0
    %201 = vmatprep.subr.mxu0 0.0
    %202 = vmatpush1.msra.mxu0 0.0
    %203 = vmatprep.subr.mxu0 0.0
    %204 = vmatpush1.msra.mxu0 0.0
    %205 = vmatprep.subr.mxu0 0.0
    %206 = vmatpush1.msra.mxu0 0.0
    %207 = vmatprep.subr.mxu0 0.0
    %208 = vmatpush1.msra.mxu0 0.0
    %209 = vmatprep.subr.mxu0 0.0
    %210 = vmatpush1.msra.mxu0 0.0
    %211 = vmatprep.subr.mxu0 0.0
    %212 = vmatpush1.msra.mxu0 0.0
    %213 = vmatprep.subr.mxu0 0.0
    %214 = vmatpush1.msra.mxu0 0.0
    %215 = vmatprep.subr.mxu0 0.0
    %216 = vmatpush1.msra.mxu0 0.0
    %217 = vmatprep.subr.mxu0 0.0
    %218 = vmatpush1.msra.mxu0 0.0
    %219 = vmatprep.subr.mxu0 0.0
    %220 = vmatpush1.msra.mxu0 0.0
    %221 = vmatprep.subr.mxu0 0.0
    %222 = vmatpush1.msra.mxu0 0.0
    %223 = vmatprep.subr.mxu0 0.0
    %224 = vmatpush1.msra.mxu0 0.0
    %225 = vmatprep.subr.mxu0 0.0
    %226 = vmatpush1.msra.mxu0 0.0
    %227 = vmatprep.subr.mxu0 0.0
    %228 = vmatpush1.msra.mxu0 0.0
    %229 = vmatprep.subr.mxu0 0.0
    %230 = vmatpush1.msra.mxu0 0.0
    %231 = vmatprep.subr.mxu0 0.0
    %232 = vmatpush1.msra.mxu0 0.0
    %233 = vmatprep.subr.mxu0 0.0
    %234 = vmatpush1.msra.mxu0 0.0
    %235 = vmatprep.subr.mxu0 0.0
    %236 = vmatpush1.msra.mxu0 0.0
    %237 = vmatprep.subr.mxu0 0.0
    %238 = vmatpush1.msra.mxu0 0.0
    %239 = vmatprep.subr.mxu0 0.0
    %240 = vmatpush1.msra.mxu0 0.0
    %241 = vmatprep.subr.mxu0 0.0
    %242 = vmatpush1.msra.mxu0 0.0
    %243 = vmatprep.subr.mxu0 0.0
    %244 = vmatpush1.msra.mxu0 0.0
    %245 = vmatprep.subr.mxu0 0.0
    %246 = vmatpush1.msra.mxu0 0.0
    %247 = vmatprep.subr.mxu0 0.0
    %248 = vmatpush1.msra.mxu0 0.0
    %249 = vmatprep.subr.mxu0 0.0
    %250 = vmatpush1.msra.mxu0 0.0
    %251 = vmatprep.mubr.f32.mxu0 0.0
    %252 = vmatmul.mubr.f32.gmra.mrb[0].mxu0 %v176
    %v253 = vpop.f32.mrb[0].mxu0
    %v254 = vadd.f32 %v115, %v253
    %v255 = vpop.f32.mrb[0].mxu0
    %256 = vmatprep.mubr.f32.mxu0 0.0
    %257 = vmatmul.mubr.f32.gmra.mrb[0].mxu0 %v179
    %v258 = vpop.f32.mrb[0].mxu0
    %v259 = vadd.f32 %v120, %v258
    %v260 = vpop.f32.mrb[0].mxu0
    %261 = vmatprep.mubr.f32.mxu0 0.0
    %262 = vmatmul.mubr.f32.gmra.mrb[0].mxu0 %v182
    %v263 = vpop.f32.mrb[0].mxu0
    %v264 = vadd.f32 %v125, %v263
    %v265 = vpop.f32.mrb[0].mxu0
    %266 = vmatprep.mubr.f32.mxu0 0.0
    %267 = vmatmul.mubr.f32.gmra.mrb[0].mxu0 %v185
    %v268 = vpop.f32.mrb[0].mxu0
    %v269 = vadd.f32 %v130, %v268
    %v270 = vpop.f32.mrb[0].mxu0
    %271 = vdwg.mxu0
    %v272 = vld [vmem:[%s1] sm:$0x1]
    %v273 = vlaneseq
    %v274 = vshrl.u32 %v273, 7
    %v275 = vsub.s32 0, %v274
    %v276 = vrot.slane %v272, %v275
    %v277 = vadd.f32 %v254, %v276
    %v278 = vadd.f32 %v259, %v276
    %v279 = vadd.f32 %v264, %v276
    %v280 = vadd.f32 %v269, %v276
    %v281 = vmax.f32 %v277, -3e+38
    %v282 = vmax.f32 %v278, -3e+38
    %v283 = vmax.f32 %v279, -3e+38
    %v284 = vmax.f32 %v280, -3e+38
    %s285 = scalar_lea.vmem %s0, 2
    %v286 = vld [vmem:[%s285] sm:$0x3]
    %v287 = vunpack.c.l.bf16 %v286
    %v288 = vlaneseq
    %v289 = vshrl.u32 %v288, 7
    %v290 = vsub.s32 0, %v289
    %v291 = vrot.slane %v287, %v290
    %v292 = vmul.f32 %v35, %v291
    %v293 = vmul.f32 %v40, %v291
    %v294 = vmul.f32 %v45, %v291
    %v295 = vmul.f32 %v50, %v291
    %v296 = vadd.f32 %v91, %v292
    %v297 = vadd.f32 %v96, %v293
    %v298 = vadd.f32 %v101, %v294
    %v299 = vadd.f32 %v106, %v295
    %v300 = vlaneseq
    %v301 = vshrl.u32 %v300, 7
    %v302 = vsub.s32 1, %v301
    %v303 = vrot.slane %v287, %v302
    %v304 = vmul.f32 %v54, %v303
    %v305 = vmul.f32 %v58, %v303
    %v306 = vmul.f32 %v62, %v303
    %v307 = vmul.f32 %v66, %v303
    %v308 = vadd.f32 %v296, %v304
    %v309 = vadd.f32 %v297, %v305
    %v310 = vadd.f32 %v298, %v306
    %v311 = vadd.f32 %v299, %v307
    %v312 = vlaneseq
    %v313 = vshrl.u32 %v312, 7
    %v314 = vsub.s32 2, %v313
    %v315 = vrot.slane %v287, %v314
    %v316 = vmul.f32 %v70, %v315
    %v317 = vmul.f32 %v74, %v315
    %v318 = vmul.f32 %v78, %v315
    %v319 = vmul.f32 %v82, %v315
    %v320 = vadd.f32 %v308, %v316
    %v321 = vadd.f32 %v309, %v317
    %v322 = vadd.f32 %v310, %v318
    %v323 = vadd.f32 %v311, %v319
    %v324 = vmax.f32 %v320, 0.0
    %v325 = vmax.f32 %v321, 0.0
    %v326 = vmax.f32 %v322, 0.0
    %v327 = vmax.f32 %v323, 0.0
    %328 = vmatprep.subr.mxu0 0.0
    %329 = vmatpush1.msra.mxu0 %v324
    %330 = vmatprep.subr.mxu0 0.0
    %331 = vmatpush1.msra.mxu0 %v325
    %332 = vmatprep.subr.mxu0 0.0
    %333 = vmatpush1.msra.mxu0 %v326
    %334 = vmatprep.subr.mxu0 0.0
    %335 = vmatpush1.msra.mxu0 %v327
    %336 = vmatprep.subr.mxu0 0.0
    %337 = vmatpush1.msra.mxu0 0.0
    %338 = vmatprep.subr.mxu0 0.0
    %339 = vmatpush1.msra.mxu0 0.0
    %340 = vmatprep.subr.mxu0 0.0
    %341 = vmatpush1.msra.mxu0 0.0
    %342 = vmatprep.subr.mxu0 0.0
    %343 = vmatpush1.msra.mxu0 0.0
    %344 = vmatprep.subr.mxu0 0.0
    %345 = vmatpush1.msra.mxu0 0.0
    %346 = vmatprep.subr.mxu0 0.0
    %347 = vmatpush1.msra.mxu0 0.0
    %348 = vmatprep.subr.mxu0 0.0
    %349 = vmatpush1.msra.mxu0 0.0
    %350 = vmatprep.subr.mxu0 0.0
    %351 = vmatpush1.msra.mxu0 0.0
    %352 = vmatprep.subr.mxu0 0.0
    %353 = vmatpush1.msra.mxu0 0.0
    %354 = vmatprep.subr.mxu0 0.0
    %355 = vmatpush1.msra.mxu0 0.0
    %356 = vmatprep.subr.mxu0 0.0
    %357 = vmatpush1.msra.mxu0 0.0
    %358 = vmatprep.subr.mxu0 0.0
    %359 = vmatpush1.msra.mxu0 0.0
    %360 = vmatprep.subr.mxu0 0.0
    %361 = vmatpush1.msra.mxu0 0.0
    %362 = vmatprep.subr.mxu0 0.0
    %363 = vmatpush1.msra.mxu0 0.0
    %364 = vmatprep.subr.mxu0 0.0
    %365 = vmatpush1.msra.mxu0 0.0
    %366 = vmatprep.subr.mxu0 0.0
    %367 = vmatpush1.msra.mxu0 0.0
    %368 = vmatprep.subr.mxu0 0.0
    %369 = vmatpush1.msra.mxu0 0.0
    %370 = vmatprep.subr.mxu0 0.0
    %371 = vmatpush1.msra.mxu0 0.0
    %372 = vmatprep.subr.mxu0 0.0
    %373 = vmatpush1.msra.mxu0 0.0
    %374 = vmatprep.subr.mxu0 0.0
    %375 = vmatpush1.msra.mxu0 0.0
    %376 = vmatprep.subr.mxu0 0.0
    %377 = vmatpush1.msra.mxu0 0.0
    %378 = vmatprep.subr.mxu0 0.0
    %379 = vmatpush1.msra.mxu0 0.0
    %380 = vmatprep.subr.mxu0 0.0
    %381 = vmatpush1.msra.mxu0 0.0
    %382 = vmatprep.subr.mxu0 0.0
    %383 = vmatpush1.msra.mxu0 0.0
    %384 = vmatprep.subr.mxu0 0.0
    %385 = vmatpush1.msra.mxu0 0.0
    %386 = vmatprep.subr.mxu0 0.0
    %387 = vmatpush1.msra.mxu0 0.0
    %388 = vmatprep.subr.mxu0 0.0
    %389 = vmatpush1.msra.mxu0 0.0
    %390 = vmatprep.subr.mxu0 0.0
    %391 = vmatpush1.msra.mxu0 0.0
    %392 = vmatprep.mubr.f32.mxu0 0.0
    %393 = vmatmul.mubr.f32.gmra.mrb[0].mxu0 %v176
    %v394 = vpop.f32.mrb[0].mxu0
    %v395 = vadd.f32 %v115, %v394
    %v396 = vpop.f32.mrb[0].mxu0
    %397 = vmatprep.mubr.f32.mxu0 0.0
    %398 = vmatmul.mubr.f32.gmra.mrb[0].mxu0 %v179
    %v399 = vpop.f32.mrb[0].mxu0
    %v400 = vadd.f32 %v120, %v399
    %v401 = vpop.f32.mrb[0].mxu0
    %402 = vmatprep.mubr.f32.mxu0 0.0
    %403 = vmatmul.mubr.f32.gmra.mrb[0].mxu0 %v182
    %v404 = vpop.f32.mrb[0].mxu0
    %v405 = vadd.f32 %v125, %v404
    %v406 = vpop.f32.mrb[0].mxu0
    %407 = vmatprep.mubr.f32.mxu0 0.0
    %408 = vmatmul.mubr.f32.gmra.mrb[0].mxu0 %v185
    %v409 = vpop.f32.mrb[0].mxu0
    %v410 = vadd.f32 %v130, %v409
    %v411 = vpop.f32.mrb[0].mxu0
    %412 = vdwg.mxu0
    %v413 = vld [vmem:[%s1 + $0x1] sm:$0x1]
    %v414 = vlaneseq
    %v415 = vshrl.u32 %v414, 7
    %v416 = vsub.s32 0, %v415
    %v417 = vrot.slane %v413, %v416
    %v418 = vadd.f32 %v395, %v417
    %v419 = vadd.f32 %v400, %v417
    %v420 = vadd.f32 %v405, %v417
    %v421 = vadd.f32 %v410, %v417
    %v422 = vmax.f32 %v281, %v418
    %v423 = vmax.f32 %v282, %v419
    %v424 = vmax.f32 %v283, %v420
    %v425 = vmax.f32 %v284, %v421
    %s426 = scalar_lea.vmem %s0, 4
    %v427 = vld [vmem:[%s426] sm:$0x3]
    %v428 = vunpack.c.l.bf16 %v427
    %v429 = vlaneseq
    %v430 = vshrl.u32 %v429, 7
    %v431 = vsub.s32 0, %v430
    %v432 = vrot.slane %v428, %v431
    %v433 = vmul.f32 %v35, %v432
    %v434 = vmul.f32 %v40, %v432
    %v435 = vmul.f32 %v45, %v432
    %v436 = vmul.f32 %v50, %v432
    %v437 = vadd.f32 %v91, %v433
    %v438 = vadd.f32 %v96, %v434
    %v439 = vadd.f32 %v101, %v435
    %v440 = vadd.f32 %v106, %v436
    %v441 = vlaneseq
    %v442 = vshrl.u32 %v441, 7
    %v443 = vsub.s32 1, %v442
    %v444 = vrot.slane %v428, %v443
    %v445 = vmul.f32 %v54, %v444
    %v446 = vmul.f32 %v58, %v444
    %v447 = vmul.f32 %v62, %v444
    %v448 = vmul.f32 %v66, %v444
    %v449 = vadd.f32 %v437, %v445
    %v450 = vadd.f32 %v438, %v446
    %v451 = vadd.f32 %v439, %v447
    %v452 = vadd.f32 %v440, %v448
    %v453 = vlaneseq
    %v454 = vshrl.u32 %v453, 7
    %v455 = vsub.s32 2, %v454
    %v456 = vrot.slane %v428, %v455
    %v457 = vmul.f32 %v70, %v456
    %v458 = vmul.f32 %v74, %v456
    %v459 = vmul.f32 %v78, %v456
    %v460 = vmul.f32 %v82, %v456
    %v461 = vadd.f32 %v449, %v457
    %v462 = vadd.f32 %v450, %v458
    %v463 = vadd.f32 %v451, %v459
    %v464 = vadd.f32 %v452, %v460
    %v465 = vmax.f32 %v461, 0.0
    %v466 = vmax.f32 %v462, 0.0
    %v467 = vmax.f32 %v463, 0.0
    %v468 = vmax.f32 %v464, 0.0
    %469 = vmatprep.subr.mxu0 0.0
    %470 = vmatpush1.msra.mxu0 %v465
    %471 = vmatprep.subr.mxu0 0.0
    %472 = vmatpush1.msra.mxu0 %v466
    %473 = vmatprep.subr.mxu0 0.0
    %474 = vmatpush1.msra.mxu0 %v467
    %475 = vmatprep.subr.mxu0 0.0
    %476 = vmatpush1.msra.mxu0 %v468
    %477 = vmatprep.subr.mxu0 0.0
    %478 = vmatpush1.msra.mxu0 0.0
    %479 = vmatprep.subr.mxu0 0.0
    %480 = vmatpush1.msra.mxu0 0.0
    %481 = vmatprep.subr.mxu0 0.0
    %482 = vmatpush1.msra.mxu0 0.0
    %483 = vmatprep.subr.mxu0 0.0
    %484 = vmatpush1.msra.mxu0 0.0
    %485 = vmatprep.subr.mxu0 0.0
    %486 = vmatpush1.msra.mxu0 0.0
    %487 = vmatprep.subr.mxu0 0.0
    %488 = vmatpush1.msra.mxu0 0.0
    %489 = vmatprep.subr.mxu0 0.0
    %490 = vmatpush1.msra.mxu0 0.0
    %491 = vmatprep.subr.mxu0 0.0
    %492 = vmatpush1.msra.mxu0 0.0
    %493 = vmatprep.subr.mxu0 0.0
    %494 = vmatpush1.msra.mxu0 0.0
    %495 = vmatprep.subr.mxu0 0.0
    %496 = vmatpush1.msra.mxu0 0.0
    %497 = vmatprep.subr.mxu0 0.0
    %498 = vmatpush1.msra.mxu0 0.0
    %499 = vmatprep.subr.mxu0 0.0
    %500 = vmatpush1.msra.mxu0 0.0
    %501 = vmatprep.subr.mxu0 0.0
    %502 = vmatpush1.msra.mxu0 0.0
    %503 = vmatprep.subr.mxu0 0.0
    %504 = vmatpush1.msra.mxu0 0.0
    %505 = vmatprep.subr.mxu0 0.0
    %506 = vmatpush1.msra.mxu0 0.0
    %507 = vmatprep.subr.mxu0 0.0
    %508 = vmatpush1.msra.mxu0 0.0
    %509 = vmatprep.subr.mxu0 0.0
    %510 = vmatpush1.msra.mxu0 0.0
    %511 = vmatprep.subr.mxu0 0.0
    %512 = vmatpush1.msra.mxu0 0.0
    %513 = vmatprep.subr.mxu0 0.0
    %514 = vmatpush1.msra.mxu0 0.0
    %515 = vmatprep.subr.mxu0 0.0
    %516 = vmatpush1.msra.mxu0 0.0
    %517 = vmatprep.subr.mxu0 0.0
    %518 = vmatpush1.msra.mxu0 0.0
    %519 = vmatprep.subr.mxu0 0.0
    %520 = vmatpush1.msra.mxu0 0.0
    %521 = vmatprep.subr.mxu0 0.0
    %522 = vmatpush1.msra.mxu0 0.0
    %523 = vmatprep.subr.mxu0 0.0
    %524 = vmatpush1.msra.mxu0 0.0
    %525 = vmatprep.subr.mxu0 0.0
    %526 = vmatpush1.msra.mxu0 0.0
    %527 = vmatprep.subr.mxu0 0.0
    %528 = vmatpush1.msra.mxu0 0.0
    %529 = vmatprep.subr.mxu0 0.0
    %530 = vmatpush1.msra.mxu0 0.0
    %531 = vmatprep.subr.mxu0 0.0
    %532 = vmatpush1.msra.mxu0 0.0
    %533 = vmatprep.mubr.f32.mxu0 0.0
    %534 = vmatmul.mubr.f32.gmra.mrb[0].mxu0 %v176
    %v535 = vpop.f32.mrb[0].mxu0
    %v536 = vadd.f32 %v115, %v535
    %v537 = vpop.f32.mrb[0].mxu0
    %538 = vmatprep.mubr.f32.mxu0 0.0
    %539 = vmatmul.mubr.f32.gmra.mrb[0].mxu0 %v179
    %v540 = vpop.f32.mrb[0].mxu0
    %v541 = vadd.f32 %v120, %v540
    %v542 = vpop.f32.mrb[0].mxu0
    %543 = vmatprep.mubr.f32.mxu0 0.0
    %544 = vmatmul.mubr.f32.gmra.mrb[0].mxu0 %v182
    %v545 = vpop.f32.mrb[0].mxu0
    %v546 = vadd.f32 %v125, %v545
    %v547 = vpop.f32.mrb[0].mxu0
    %548 = vmatprep.mubr.f32.mxu0 0.0
    %549 = vmatmul.mubr.f32.gmra.mrb[0].mxu0 %v185
    %v550 = vpop.f32.mrb[0].mxu0
    %v551 = vadd.f32 %v130, %v550
    %v552 = vpop.f32.mrb[0].mxu0
    %553 = vdwg.mxu0
    %v554 = vld [vmem:[%s1 + $0x2] sm:$0x1]
    %v555 = vlaneseq
    %v556 = vshrl.u32 %v555, 7
    %v557 = vsub.s32 0, %v556
    %v558 = vrot.slane %v554, %v557
    %v559 = vadd.f32 %v536, %v558
    %v560 = vadd.f32 %v541, %v558
    %v561 = vadd.f32 %v546, %v558
    %v562 = vadd.f32 %v551, %v558
    %v563 = vmax.f32 %v422, %v559
    %v564 = vmax.f32 %v423, %v560
    %v565 = vmax.f32 %v424, %v561
    %v566 = vmax.f32 %v425, %v562
    %s567 = scalar_lea.vmem %s0, 6
    %v568 = vld [vmem:[%s567] sm:$0x3]
    %v569 = vunpack.c.l.bf16 %v568
    %v570 = vlaneseq
    %v571 = vshrl.u32 %v570, 7
    %v572 = vsub.s32 0, %v571
    %v573 = vrot.slane %v569, %v572
    %v574 = vmul.f32 %v35, %v573
    %v575 = vmul.f32 %v40, %v573
    %v576 = vmul.f32 %v45, %v573
    %v577 = vmul.f32 %v50, %v573
    %v578 = vadd.f32 %v91, %v574
    %v579 = vadd.f32 %v96, %v575
    %v580 = vadd.f32 %v101, %v576
    %v581 = vadd.f32 %v106, %v577
    %v582 = vlaneseq
    %v583 = vshrl.u32 %v582, 7
    %v584 = vsub.s32 1, %v583
    %v585 = vrot.slane %v569, %v584
    %v586 = vmul.f32 %v54, %v585
    %v587 = vmul.f32 %v58, %v585
    %v588 = vmul.f32 %v62, %v585
    %v589 = vmul.f32 %v66, %v585
    %v590 = vadd.f32 %v578, %v586
    %v591 = vadd.f32 %v579, %v587
    %v592 = vadd.f32 %v580, %v588
    %v593 = vadd.f32 %v581, %v589
    %v594 = vlaneseq
    %v595 = vshrl.u32 %v594, 7
    %v596 = vsub.s32 2, %v595
    %v597 = vrot.slane %v569, %v596
    %v598 = vmul.f32 %v70, %v597
    %v599 = vmul.f32 %v74, %v597
    %v600 = vmul.f32 %v78, %v597
    %v601 = vmul.f32 %v82, %v597
    %v602 = vadd.f32 %v590, %v598
    %v603 = vadd.f32 %v591, %v599
    %v604 = vadd.f32 %v592, %v600
    %v605 = vadd.f32 %v593, %v601
    %v606 = vmax.f32 %v602, 0.0
    %v607 = vmax.f32 %v603, 0.0
    %v608 = vmax.f32 %v604, 0.0
    %v609 = vmax.f32 %v605, 0.0
    %610 = vmatprep.subr.mxu0 0.0
    %611 = vmatpush1.msra.mxu0 %v606
    %612 = vmatprep.subr.mxu0 0.0
    %613 = vmatpush1.msra.mxu0 %v607
    %614 = vmatprep.subr.mxu0 0.0
    %615 = vmatpush1.msra.mxu0 %v608
    %616 = vmatprep.subr.mxu0 0.0
    %617 = vmatpush1.msra.mxu0 %v609
    %618 = vmatprep.subr.mxu0 0.0
    %619 = vmatpush1.msra.mxu0 0.0
    %620 = vmatprep.subr.mxu0 0.0
    %621 = vmatpush1.msra.mxu0 0.0
    %622 = vmatprep.subr.mxu0 0.0
    %623 = vmatpush1.msra.mxu0 0.0
    %624 = vmatprep.subr.mxu0 0.0
    %625 = vmatpush1.msra.mxu0 0.0
    %626 = vmatprep.subr.mxu0 0.0
    %627 = vmatpush1.msra.mxu0 0.0
    %628 = vmatprep.subr.mxu0 0.0
    %629 = vmatpush1.msra.mxu0 0.0
    %630 = vmatprep.subr.mxu0 0.0
    %631 = vmatpush1.msra.mxu0 0.0
    %632 = vmatprep.subr.mxu0 0.0
    %633 = vmatpush1.msra.mxu0 0.0
    %634 = vmatprep.subr.mxu0 0.0
    %635 = vmatpush1.msra.mxu0 0.0
    %636 = vmatprep.subr.mxu0 0.0
    %637 = vmatpush1.msra.mxu0 0.0
    %638 = vmatprep.subr.mxu0 0.0
    %639 = vmatpush1.msra.mxu0 0.0
    %640 = vmatprep.subr.mxu0 0.0
    %641 = vmatpush1.msra.mxu0 0.0
    %642 = vmatprep.subr.mxu0 0.0
    %643 = vmatpush1.msra.mxu0 0.0
    %644 = vmatprep.subr.mxu0 0.0
    %645 = vmatpush1.msra.mxu0 0.0
    %646 = vmatprep.subr.mxu0 0.0
    %647 = vmatpush1.msra.mxu0 0.0
    %648 = vmatprep.subr.mxu0 0.0
    %649 = vmatpush1.msra.mxu0 0.0
    %650 = vmatprep.subr.mxu0 0.0
    %651 = vmatpush1.msra.mxu0 0.0
    %652 = vmatprep.subr.mxu0 0.0
    %653 = vmatpush1.msra.mxu0 0.0
    %654 = vmatprep.subr.mxu0 0.0
    %655 = vmatpush1.msra.mxu0 0.0
    %656 = vmatprep.subr.mxu0 0.0
    %657 = vmatpush1.msra.mxu0 0.0
    %658 = vmatprep.subr.mxu0 0.0
    %659 = vmatpush1.msra.mxu0 0.0
    %660 = vmatprep.subr.mxu0 0.0
    %661 = vmatpush1.msra.mxu0 0.0
    %662 = vmatprep.subr.mxu0 0.0
    %663 = vmatpush1.msra.mxu0 0.0
    %664 = vmatprep.subr.mxu0 0.0
    %665 = vmatpush1.msra.mxu0 0.0
    %666 = vmatprep.subr.mxu0 0.0
    %667 = vmatpush1.msra.mxu0 0.0
    %668 = vmatprep.subr.mxu0 0.0
    %669 = vmatpush1.msra.mxu0 0.0
    %670 = vmatprep.subr.mxu0 0.0
    %671 = vmatpush1.msra.mxu0 0.0
    %672 = vmatprep.subr.mxu0 0.0
    %673 = vmatpush1.msra.mxu0 0.0
    %674 = vmatprep.mubr.f32.mxu0 0.0
    %675 = vmatmul.mubr.f32.gmra.mrb[0].mxu0 %v176
    %v676 = vpop.f32.mrb[0].mxu0
    %v677 = vadd.f32 %v115, %v676
    %v678 = vpop.f32.mrb[0].mxu0
    %679 = vmatprep.mubr.f32.mxu0 0.0
    %680 = vmatmul.mubr.f32.gmra.mrb[0].mxu0 %v179
    %v681 = vpop.f32.mrb[0].mxu0
    %v682 = vadd.f32 %v120, %v681
    %v683 = vpop.f32.mrb[0].mxu0
    %684 = vmatprep.mubr.f32.mxu0 0.0
    %685 = vmatmul.mubr.f32.gmra.mrb[0].mxu0 %v182
    %v686 = vpop.f32.mrb[0].mxu0
    %v687 = vadd.f32 %v125, %v686
    %v688 = vpop.f32.mrb[0].mxu0
    %689 = vmatprep.mubr.f32.mxu0 0.0
    %690 = vmatmul.mubr.f32.gmra.mrb[0].mxu0 %v185
    %v691 = vpop.f32.mrb[0].mxu0
    %v692 = vadd.f32 %v130, %v691
    %v693 = vpop.f32.mrb[0].mxu0
    %694 = vdwg.mxu0
    %v695 = vld [vmem:[%s1 + $0x3] sm:$0x1]
    %v696 = vlaneseq
    %v697 = vshrl.u32 %v696, 7
    %v698 = vsub.s32 0, %v697
    %v699 = vrot.slane %v695, %v698
    %v700 = vadd.f32 %v677, %v699
    %v701 = vadd.f32 %v682, %v699
    %v702 = vadd.f32 %v687, %v699
    %v703 = vadd.f32 %v692, %v699
    %v704 = vmax.f32 %v563, %v700
    %v705 = vmax.f32 %v564, %v701
    %v706 = vmax.f32 %v565, %v702
    %v707 = vmax.f32 %v566, %v703
    %s708 = scalar_lea.vmem %s0, 8
    %v709 = vld [vmem:[%s708] sm:$0x3]
    %v710 = vunpack.c.l.bf16 %v709
    %v711 = vlaneseq
    %v712 = vshrl.u32 %v711, 7
    %v713 = vsub.s32 0, %v712
    %v714 = vrot.slane %v710, %v713
    %v715 = vmul.f32 %v35, %v714
    %v716 = vmul.f32 %v40, %v714
    %v717 = vmul.f32 %v45, %v714
    %v718 = vmul.f32 %v50, %v714
    %v719 = vadd.f32 %v91, %v715
    %v720 = vadd.f32 %v96, %v716
    %v721 = vadd.f32 %v101, %v717
    %v722 = vadd.f32 %v106, %v718
    %v723 = vlaneseq
    %v724 = vshrl.u32 %v723, 7
    %v725 = vsub.s32 1, %v724
    %v726 = vrot.slane %v710, %v725
    %v727 = vmul.f32 %v54, %v726
    %v728 = vmul.f32 %v58, %v726
    %v729 = vmul.f32 %v62, %v726
    %v730 = vmul.f32 %v66, %v726
    %v731 = vadd.f32 %v719, %v727
    %v732 = vadd.f32 %v720, %v728
    %v733 = vadd.f32 %v721, %v729
    %v734 = vadd.f32 %v722, %v730
    %v735 = vlaneseq
    %v736 = vshrl.u32 %v735, 7
    %v737 = vsub.s32 2, %v736
    %v738 = vrot.slane %v710, %v737
    %v739 = vmul.f32 %v70, %v738
    %v740 = vmul.f32 %v74, %v738
    %v741 = vmul.f32 %v78, %v738
    %v742 = vmul.f32 %v82, %v738
    %v743 = vadd.f32 %v731, %v739
    %v744 = vadd.f32 %v732, %v740
    %v745 = vadd.f32 %v733, %v741
    %v746 = vadd.f32 %v734, %v742
    %v747 = vmax.f32 %v743, 0.0
    %v748 = vmax.f32 %v744, 0.0
    %v749 = vmax.f32 %v745, 0.0
    %v750 = vmax.f32 %v746, 0.0
    %751 = vmatprep.subr.mxu0 0.0
    %752 = vmatpush1.msra.mxu0 %v747
    %753 = vmatprep.subr.mxu0 0.0
    %754 = vmatpush1.msra.mxu0 %v748
    %755 = vmatprep.subr.mxu0 0.0
    %756 = vmatpush1.msra.mxu0 %v749
    %757 = vmatprep.subr.mxu0 0.0
    %758 = vmatpush1.msra.mxu0 %v750
    %759 = vmatprep.subr.mxu0 0.0
    %760 = vmatpush1.msra.mxu0 0.0
    %761 = vmatprep.subr.mxu0 0.0
    %762 = vmatpush1.msra.mxu0 0.0
    %763 = vmatprep.subr.mxu0 0.0
    %764 = vmatpush1.msra.mxu0 0.0
    %765 = vmatprep.subr.mxu0 0.0
    %766 = vmatpush1.msra.mxu0 0.0
    %767 = vmatprep.subr.mxu0 0.0
    %768 = vmatpush1.msra.mxu0 0.0
    %769 = vmatprep.subr.mxu0 0.0
    %770 = vmatpush1.msra.mxu0 0.0
    %771 = vmatprep.subr.mxu0 0.0
    %772 = vmatpush1.msra.mxu0 0.0
    %773 = vmatprep.subr.mxu0 0.0
    %774 = vmatpush1.msra.mxu0 0.0
    %775 = vmatprep.subr.mxu0 0.0
    %776 = vmatpush1.msra.mxu0 0.0
    %777 = vmatprep.subr.mxu0 0.0
    %778 = vmatpush1.msra.mxu0 0.0
    %779 = vmatprep.subr.mxu0 0.0
    %780 = vmatpush1.msra.mxu0 0.0
    %781 = vmatprep.subr.mxu0 0.0
    %782 = vmatpush1.msra.mxu0 0.0
    %783 = vmatprep.subr.mxu0 0.0
    %784 = vmatpush1.msra.mxu0 0.0
    %785 = vmatprep.subr.mxu0 0.0
    %786 = vmatpush1.msra.mxu0 0.0
    %787 = vmatprep.subr.mxu0 0.0
    %788 = vmatpush1.msra.mxu0 0.0
    %789 = vmatprep.subr.mxu0 0.0
    %790 = vmatpush1.msra.mxu0 0.0
    %791 = vmatprep.subr.mxu0 0.0
    %792 = vmatpush1.msra.mxu0 0.0
    %793 = vmatprep.subr.mxu0 0.0
    %794 = vmatpush1.msra.mxu0 0.0
    %795 = vmatprep.subr.mxu0 0.0
    %796 = vmatpush1.msra.mxu0 0.0
    %797 = vmatprep.subr.mxu0 0.0
    %798 = vmatpush1.msra.mxu0 0.0
    %799 = vmatprep.subr.mxu0 0.0
    %800 = vmatpush1.msra.mxu0 0.0
    %801 = vmatprep.subr.mxu0 0.0
    %802 = vmatpush1.msra.mxu0 0.0
    %803 = vmatprep.subr.mxu0 0.0
    %804 = vmatpush1.msra.mxu0 0.0
    %805 = vmatprep.subr.mxu0 0.0
    %806 = vmatpush1.msra.mxu0 0.0
    %807 = vmatprep.subr.mxu0 0.0
    %808 = vmatpush1.msra.mxu0 0.0
    %809 = vmatprep.subr.mxu0 0.0
    %810 = vmatpush1.msra.mxu0 0.0
    %811 = vmatprep.subr.mxu0 0.0
    %812 = vmatpush1.msra.mxu0 0.0
    %813 = vmatprep.subr.mxu0 0.0
    %814 = vmatpush1.msra.mxu0 0.0
    %815 = vmatprep.mubr.f32.mxu0 0.0
    %816 = vmatmul.mubr.f32.gmra.mrb[0].mxu0 %v176
    %v817 = vpop.f32.mrb[0].mxu0
    %v818 = vadd.f32 %v115, %v817
    %v819 = vpop.f32.mrb[0].mxu0
    %820 = vmatprep.mubr.f32.mxu0 0.0
    %821 = vmatmul.mubr.f32.gmra.mrb[0].mxu0 %v179
    %v822 = vpop.f32.mrb[0].mxu0
    %v823 = vadd.f32 %v120, %v822
    %v824 = vpop.f32.mrb[0].mxu0
    %825 = vmatprep.mubr.f32.mxu0 0.0
    %826 = vmatmul.mubr.f32.gmra.mrb[0].mxu0 %v182
    %v827 = vpop.f32.mrb[0].mxu0
    %v828 = vadd.f32 %v125, %v827
    %v829 = vpop.f32.mrb[0].mxu0
    %830 = vmatprep.mubr.f32.mxu0 0.0
    %831 = vmatmul.mubr.f32.gmra.mrb[0].mxu0 %v185
    %v832 = vpop.f32.mrb[0].mxu0
    %v833 = vadd.f32 %v130, %v832
    %v834 = vpop.f32.mrb[0].mxu0
    %835 = vdwg.mxu0
    %v836 = vld [vmem:[%s1 + $0x4] sm:$0x1]
    %v837 = vlaneseq
    %v838 = vshrl.u32 %v837, 7
    %v839 = vsub.s32 0, %v838
    %v840 = vrot.slane %v836, %v839
    %v841 = vadd.f32 %v818, %v840
    %v842 = vadd.f32 %v823, %v840
    %v843 = vadd.f32 %v828, %v840
    %v844 = vadd.f32 %v833, %v840
    %v845 = vmax.f32 %v704, %v841
    %v846 = vmax.f32 %v705, %v842
    %v847 = vmax.f32 %v706, %v843
    %v848 = vmax.f32 %v707, %v844
    %s849 = scalar_lea.vmem %s0, 10
    %v850 = vld [vmem:[%s849] sm:$0x3]
    %v851 = vunpack.c.l.bf16 %v850
    %v852 = vlaneseq
    %v853 = vshrl.u32 %v852, 7
    %v854 = vsub.s32 0, %v853
    %v855 = vrot.slane %v851, %v854
    %v856 = vmul.f32 %v35, %v855
    %v857 = vmul.f32 %v40, %v855
    %v858 = vmul.f32 %v45, %v855
    %v859 = vmul.f32 %v50, %v855
    %v860 = vadd.f32 %v91, %v856
    %v861 = vadd.f32 %v96, %v857
    %v862 = vadd.f32 %v101, %v858
    %v863 = vadd.f32 %v106, %v859
    %v864 = vlaneseq
    %v865 = vshrl.u32 %v864, 7
    %v866 = vsub.s32 1, %v865
    %v867 = vrot.slane %v851, %v866
    %v868 = vmul.f32 %v54, %v867
    %v869 = vmul.f32 %v58, %v867
    %v870 = vmul.f32 %v62, %v867
    %v871 = vmul.f32 %v66, %v867
    %v872 = vadd.f32 %v860, %v868
    %v873 = vadd.f32 %v861, %v869
    %v874 = vadd.f32 %v862, %v870
    %v875 = vadd.f32 %v863, %v871
    %v876 = vlaneseq
    %v877 = vshrl.u32 %v876, 7
    %v878 = vsub.s32 2, %v877
    %v879 = vrot.slane %v851, %v878
    %v880 = vmul.f32 %v70, %v879
    %v881 = vmul.f32 %v74, %v879
    %v882 = vmul.f32 %v78, %v879
    %v883 = vmul.f32 %v82, %v879
    %v884 = vadd.f32 %v872, %v880
    %v885 = vadd.f32 %v873, %v881
    %v886 = vadd.f32 %v874, %v882
    %v887 = vadd.f32 %v875, %v883
    %v888 = vmax.f32 %v884, 0.0
    %v889 = vmax.f32 %v885, 0.0
    %v890 = vmax.f32 %v886, 0.0
    %v891 = vmax.f32 %v887, 0.0
    %892 = vmatprep.subr.mxu0 0.0
    %893 = vmatpush1.msra.mxu0 %v888
    %894 = vmatprep.subr.mxu0 0.0
    %895 = vmatpush1.msra.mxu0 %v889
    %896 = vmatprep.subr.mxu0 0.0
    %897 = vmatpush1.msra.mxu0 %v890
    %898 = vmatprep.subr.mxu0 0.0
    %899 = vmatpush1.msra.mxu0 %v891
    %900 = vmatprep.subr.mxu0 0.0
    %901 = vmatpush1.msra.mxu0 0.0
    %902 = vmatprep.subr.mxu0 0.0
    %903 = vmatpush1.msra.mxu0 0.0
    %904 = vmatprep.subr.mxu0 0.0
    %905 = vmatpush1.msra.mxu0 0.0
    %906 = vmatprep.subr.mxu0 0.0
    %907 = vmatpush1.msra.mxu0 0.0
    %908 = vmatprep.subr.mxu0 0.0
    %909 = vmatpush1.msra.mxu0 0.0
    %910 = vmatprep.subr.mxu0 0.0
    %911 = vmatpush1.msra.mxu0 0.0
    %912 = vmatprep.subr.mxu0 0.0
    %913 = vmatpush1.msra.mxu0 0.0
    %914 = vmatprep.subr.mxu0 0.0
    %915 = vmatpush1.msra.mxu0 0.0
    %916 = vmatprep.subr.mxu0 0.0
    %917 = vmatpush1.msra.mxu0 0.0
    %918 = vmatprep.subr.mxu0 0.0
    %919 = vmatpush1.msra.mxu0 0.0
    %920 = vmatprep.subr.mxu0 0.0
    %921 = vmatpush1.msra.mxu0 0.0
    %922 = vmatprep.subr.mxu0 0.0
    %923 = vmatpush1.msra.mxu0 0.0
    %924 = vmatprep.subr.mxu0 0.0
    %925 = vmatpush1.msra.mxu0 0.0
    %926 = vmatprep.subr.mxu0 0.0
    %927 = vmatpush1.msra.mxu0 0.0
    %928 = vmatprep.subr.mxu0 0.0
    %929 = vmatpush1.msra.mxu0 0.0
    %930 = vmatprep.subr.mxu0 0.0
    %931 = vmatpush1.msra.mxu0 0.0
    %932 = vmatprep.subr.mxu0 0.0
    %933 = vmatpush1.msra.mxu0 0.0
    %934 = vmatprep.subr.mxu0 0.0
    %935 = vmatpush1.msra.mxu0 0.0
    %936 = vmatprep.subr.mxu0 0.0
    %937 = vmatpush1.msra.mxu0 0.0
    %938 = vmatprep.subr.mxu0 0.0
    %939 = vmatpush1.msra.mxu0 0.0
    %940 = vmatprep.subr.mxu0 0.0
    %941 = vmatpush1.msra.mxu0 0.0
    %942 = vmatprep.subr.mxu0 0.0
    %943 = vmatpush1.msra.mxu0 0.0
    %944 = vmatprep.subr.mxu0 0.0
    %945 = vmatpush1.msra.mxu0 0.0
    %946 = vmatprep.subr.mxu0 0.0
    %947 = vmatpush1.msra.mxu0 0.0
    %948 = vmatprep.subr.mxu0 0.0
    %949 = vmatpush1.msra.mxu0 0.0
    %950 = vmatprep.subr.mxu0 0.0
    %951 = vmatpush1.msra.mxu0 0.0
    %952 = vmatprep.subr.mxu0 0.0
    %953 = vmatpush1.msra.mxu0 0.0
    %954 = vmatprep.subr.mxu0 0.0
    %955 = vmatpush1.msra.mxu0 0.0
    %956 = vmatprep.mubr.f32.mxu0 0.0
    %957 = vmatmul.mubr.f32.gmra.mrb[0].mxu0 %v176
    %v958 = vpop.f32.mrb[0].mxu0
    %v959 = vadd.f32 %v115, %v958
    %v960 = vpop.f32.mrb[0].mxu0
    %961 = vmatprep.mubr.f32.mxu0 0.0
    %962 = vmatmul.mubr.f32.gmra.mrb[0].mxu0 %v179
    %v963 = vpop.f32.mrb[0].mxu0
    %v964 = vadd.f32 %v120, %v963
    %v965 = vpop.f32.mrb[0].mxu0
    %966 = vmatprep.mubr.f32.mxu0 0.0
    %967 = vmatmul.mubr.f32.gmra.mrb[0].mxu0 %v182
    %v968 = vpop.f32.mrb[0].mxu0
    %v969 = vadd.f32 %v125, %v968
    %v970 = vpop.f32.mrb[0].mxu0
    %971 = vmatprep.mubr.f32.mxu0 0.0
    %972 = vmatmul.mubr.f32.gmra.mrb[0].mxu0 %v185
    %v973 = vpop.f32.mrb[0].mxu0
    %v974 = vadd.f32 %v130, %v973
    %v975 = vpop.f32.mrb[0].mxu0
    %976 = vdwg.mxu0
    %v977 = vld [vmem:[%s1 + $0x5] sm:$0x1]
    %v978 = vlaneseq
    %v979 = vshrl.u32 %v978, 7
    %v980 = vsub.s32 0, %v979
    %v981 = vrot.slane %v977, %v980
    %v982 = vadd.f32 %v959, %v981
    %v983 = vadd.f32 %v964, %v981
    %v984 = vadd.f32 %v969, %v981
    %v985 = vadd.f32 %v974, %v981
    %v986 = vmax.f32 %v845, %v982
    %v987 = vmax.f32 %v846, %v983
    %v988 = vmax.f32 %v847, %v984
    %v989 = vmax.f32 %v848, %v985
    %s990 = scalar_lea.vmem %s0, 12
    %v991 = vld [vmem:[%s990] sm:$0x3]
    %v992 = vunpack.c.l.bf16 %v991
    %v993 = vlaneseq
    %v994 = vshrl.u32 %v993, 7
    %v995 = vsub.s32 0, %v994
    %v996 = vrot.slane %v992, %v995
    %v997 = vmul.f32 %v35, %v996
    %v998 = vmul.f32 %v40, %v996
    %v999 = vmul.f32 %v45, %v996
    %v1000 = vmul.f32 %v50, %v996
    %v1001 = vadd.f32 %v91, %v997
    %v1002 = vadd.f32 %v96, %v998
    %v1003 = vadd.f32 %v101, %v999
    %v1004 = vadd.f32 %v106, %v1000
    %v1005 = vlaneseq
    %v1006 = vshrl.u32 %v1005, 7
    %v1007 = vsub.s32 1, %v1006
    %v1008 = vrot.slane %v992, %v1007
    %v1009 = vmul.f32 %v54, %v1008
    %v1010 = vmul.f32 %v58, %v1008
    %v1011 = vmul.f32 %v62, %v1008
    %v1012 = vmul.f32 %v66, %v1008
    %v1013 = vadd.f32 %v1001, %v1009
    %v1014 = vadd.f32 %v1002, %v1010
    %v1015 = vadd.f32 %v1003, %v1011
    %v1016 = vadd.f32 %v1004, %v1012
    %v1017 = vlaneseq
    %v1018 = vshrl.u32 %v1017, 7
    %v1019 = vsub.s32 2, %v1018
    %v1020 = vrot.slane %v992, %v1019
    %v1021 = vmul.f32 %v70, %v1020
    %v1022 = vmul.f32 %v74, %v1020
    %v1023 = vmul.f32 %v78, %v1020
    %v1024 = vmul.f32 %v82, %v1020
    %v1025 = vadd.f32 %v1013, %v1021
    %v1026 = vadd.f32 %v1014, %v1022
    %v1027 = vadd.f32 %v1015, %v1023
    %v1028 = vadd.f32 %v1016, %v1024
    %v1029 = vmax.f32 %v1025, 0.0
    %v1030 = vmax.f32 %v1026, 0.0
    %v1031 = vmax.f32 %v1027, 0.0
    %v1032 = vmax.f32 %v1028, 0.0
    %1033 = vmatprep.subr.mxu0 0.0
    %1034 = vmatpush1.msra.mxu0 %v1029
    %1035 = vmatprep.subr.mxu0 0.0
    %1036 = vmatpush1.msra.mxu0 %v1030
    %1037 = vmatprep.subr.mxu0 0.0
    %1038 = vmatpush1.msra.mxu0 %v1031
    %1039 = vmatprep.subr.mxu0 0.0
    %1040 = vmatpush1.msra.mxu0 %v1032
    %1041 = vmatprep.subr.mxu0 0.0
    %1042 = vmatpush1.msra.mxu0 0.0
    %1043 = vmatprep.subr.mxu0 0.0
    %1044 = vmatpush1.msra.mxu0 0.0
    %1045 = vmatprep.subr.mxu0 0.0
    %1046 = vmatpush1.msra.mxu0 0.0
    %1047 = vmatprep.subr.mxu0 0.0
    %1048 = vmatpush1.msra.mxu0 0.0
    %1049 = vmatprep.subr.mxu0 0.0
    %1050 = vmatpush1.msra.mxu0 0.0
    %1051 = vmatprep.subr.mxu0 0.0
    %1052 = vmatpush1.msra.mxu0 0.0
    %1053 = vmatprep.subr.mxu0 0.0
    %1054 = vmatpush1.msra.mxu0 0.0
    %1055 = vmatprep.subr.mxu0 0.0
    %1056 = vmatpush1.msra.mxu0 0.0
    %1057 = vmatprep.subr.mxu0 0.0
    %1058 = vmatpush1.msra.mxu0 0.0
    %1059 = vmatprep.subr.mxu0 0.0
    %1060 = vmatpush1.msra.mxu0 0.0
    %1061 = vmatprep.subr.mxu0 0.0
    %1062 = vmatpush1.msra.mxu0 0.0
    %1063 = vmatprep.subr.mxu0 0.0
    %1064 = vmatpush1.msra.mxu0 0.0
    %1065 = vmatprep.subr.mxu0 0.0
    %1066 = vmatpush1.msra.mxu0 0.0
    %1067 = vmatprep.subr.mxu0 0.0
    %1068 = vmatpush1.msra.mxu0 0.0
    %1069 = vmatprep.subr.mxu0 0.0
    %1070 = vmatpush1.msra.mxu0 0.0
    %1071 = vmatprep.subr.mxu0 0.0
    %1072 = vmatpush1.msra.mxu0 0.0
    %1073 = vmatprep.subr.mxu0 0.0
    %1074 = vmatpush1.msra.mxu0 0.0
    %1075 = vmatprep.subr.mxu0 0.0
    %1076 = vmatpush1.msra.mxu0 0.0
    %1077 = vmatprep.subr.mxu0 0.0
    %1078 = vmatpush1.msra.mxu0 0.0
    %1079 = vmatprep.subr.mxu0 0.0
    %1080 = vmatpush1.msra.mxu0 0.0
    %1081 = vmatprep.subr.mxu0 0.0
    %1082 = vmatpush1.msra.mxu0 0.0
    %1083 = vmatprep.subr.mxu0 0.0
    %1084 = vmatpush1.msra.mxu0 0.0
    %1085 = vmatprep.subr.mxu0 0.0
    %1086 = vmatpush1.msra.mxu0 0.0
    %1087 = vmatprep.subr.mxu0 0.0
    %1088 = vmatpush1.msra.mxu0 0.0
    %1089 = vmatprep.subr.mxu0 0.0
    %1090 = vmatpush1.msra.mxu0 0.0
    %1091 = vmatprep.subr.mxu0 0.0
    %1092 = vmatpush1.msra.mxu0 0.0
    %1093 = vmatprep.subr.mxu0 0.0
    %1094 = vmatpush1.msra.mxu0 0.0
    %1095 = vmatprep.subr.mxu0 0.0
    %1096 = vmatpush1.msra.mxu0 0.0
    %1097 = vmatprep.mubr.f32.mxu0 0.0
    %1098 = vmatmul.mubr.f32.gmra.mrb[0].mxu0 %v176
    %v1099 = vpop.f32.mrb[0].mxu0
    %v1100 = vadd.f32 %v115, %v1099
    %v1101 = vpop.f32.mrb[0].mxu0
    %1102 = vmatprep.mubr.f32.mxu0 0.0
    %1103 = vmatmul.mubr.f32.gmra.mrb[0].mxu0 %v179
    %v1104 = vpop.f32.mrb[0].mxu0
    %v1105 = vadd.f32 %v120, %v1104
    %v1106 = vpop.f32.mrb[0].mxu0
    %1107 = vmatprep.mubr.f32.mxu0 0.0
    %1108 = vmatmul.mubr.f32.gmra.mrb[0].mxu0 %v182
    %v1109 = vpop.f32.mrb[0].mxu0
    %v1110 = vadd.f32 %v125, %v1109
    %v1111 = vpop.f32.mrb[0].mxu0
    %1112 = vmatprep.mubr.f32.mxu0 0.0
    %1113 = vmatmul.mubr.f32.gmra.mrb[0].mxu0 %v185
    %v1114 = vpop.f32.mrb[0].mxu0
    %v1115 = vadd.f32 %v130, %v1114
    %v1116 = vpop.f32.mrb[0].mxu0
    %1117 = vdwg.mxu0
    %v1118 = vld [vmem:[%s1 + $0x6] sm:$0x1]
    %v1119 = vlaneseq
    %v1120 = vshrl.u32 %v1119, 7
    %v1121 = vsub.s32 0, %v1120
    %v1122 = vrot.slane %v1118, %v1121
    %v1123 = vadd.f32 %v1100, %v1122
    %v1124 = vadd.f32 %v1105, %v1122
    %v1125 = vadd.f32 %v1110, %v1122
    %v1126 = vadd.f32 %v1115, %v1122
    %v1127 = vmax.f32 %v986, %v1123
    %v1128 = vmax.f32 %v987, %v1124
    %v1129 = vmax.f32 %v988, %v1125
    %v1130 = vmax.f32 %v989, %v1126
    %s1131 = scalar_lea.vmem %s0, 14
    %v1132 = vld [vmem:[%s1131] sm:$0x3]
    %v1133 = vunpack.c.l.bf16 %v1132
    %v1134 = vlaneseq
    %v1135 = vshrl.u32 %v1134, 7
    %v1136 = vsub.s32 0, %v1135
    %v1137 = vrot.slane %v1133, %v1136
    %v1138 = vmul.f32 %v35, %v1137
    %v1139 = vmul.f32 %v40, %v1137
    %v1140 = vmul.f32 %v45, %v1137
    %v1141 = vmul.f32 %v50, %v1137
    %v1142 = vadd.f32 %v91, %v1138
    %v1143 = vadd.f32 %v96, %v1139
    %v1144 = vadd.f32 %v101, %v1140
    %v1145 = vadd.f32 %v106, %v1141
    %v1146 = vlaneseq
    %v1147 = vshrl.u32 %v1146, 7
    %v1148 = vsub.s32 1, %v1147
    %v1149 = vrot.slane %v1133, %v1148
    %v1150 = vmul.f32 %v54, %v1149
    %v1151 = vmul.f32 %v58, %v1149
    %v1152 = vmul.f32 %v62, %v1149
    %v1153 = vmul.f32 %v66, %v1149
    %v1154 = vadd.f32 %v1142, %v1150
    %v1155 = vadd.f32 %v1143, %v1151
    %v1156 = vadd.f32 %v1144, %v1152
    %v1157 = vadd.f32 %v1145, %v1153
    %v1158 = vlaneseq
    %v1159 = vshrl.u32 %v1158, 7
    %v1160 = vsub.s32 2, %v1159
    %v1161 = vrot.slane %v1133, %v1160
    %v1162 = vmul.f32 %v70, %v1161
    %v1163 = vmul.f32 %v74, %v1161
    %v1164 = vmul.f32 %v78, %v1161
    %v1165 = vmul.f32 %v82, %v1161
    %v1166 = vadd.f32 %v1154, %v1162
    %v1167 = vadd.f32 %v1155, %v1163
    %v1168 = vadd.f32 %v1156, %v1164
    %v1169 = vadd.f32 %v1157, %v1165
    %v1170 = vmax.f32 %v1166, 0.0
    %v1171 = vmax.f32 %v1167, 0.0
    %v1172 = vmax.f32 %v1168, 0.0
    %v1173 = vmax.f32 %v1169, 0.0
    %1174 = vmatprep.subr.mxu0 0.0
    %1175 = vmatpush1.msra.mxu0 %v1170
    %1176 = vmatprep.subr.mxu0 0.0
    %1177 = vmatpush1.msra.mxu0 %v1171
    %1178 = vmatprep.subr.mxu0 0.0
    %1179 = vmatpush1.msra.mxu0 %v1172
    %1180 = vmatprep.subr.mxu0 0.0
    %1181 = vmatpush1.msra.mxu0 %v1173
    %1182 = vmatprep.subr.mxu0 0.0
    %1183 = vmatpush1.msra.mxu0 0.0
    %1184 = vmatprep.subr.mxu0 0.0
    %1185 = vmatpush1.msra.mxu0 0.0
    %1186 = vmatprep.subr.mxu0 0.0
    %1187 = vmatpush1.msra.mxu0 0.0
    %1188 = vmatprep.subr.mxu0 0.0
    %1189 = vmatpush1.msra.mxu0 0.0
    %1190 = vmatprep.subr.mxu0 0.0
    %1191 = vmatpush1.msra.mxu0 0.0
    %1192 = vmatprep.subr.mxu0 0.0
    %1193 = vmatpush1.msra.mxu0 0.0
    %1194 = vmatprep.subr.mxu0 0.0
    %1195 = vmatpush1.msra.mxu0 0.0
    %1196 = vmatprep.subr.mxu0 0.0
    %1197 = vmatpush1.msra.mxu0 0.0
    %1198 = vmatprep.subr.mxu0 0.0
    %1199 = vmatpush1.msra.mxu0 0.0
    %1200 = vmatprep.subr.mxu0 0.0
    %1201 = vmatpush1.msra.mxu0 0.0
    %1202 = vmatprep.subr.mxu0 0.0
    %1203 = vmatpush1.msra.mxu0 0.0
    %1204 = vmatprep.subr.mxu0 0.0
    %1205 = vmatpush1.msra.mxu0 0.0
    %1206 = vmatprep.subr.mxu0 0.0
    %1207 = vmatpush1.msra.mxu0 0.0
    %1208 = vmatprep.subr.mxu0 0.0
    %1209 = vmatpush1.msra.mxu0 0.0
    %1210 = vmatprep.subr.mxu0 0.0
    %1211 = vmatpush1.msra.mxu0 0.0
    %1212 = vmatprep.subr.mxu0 0.0
    %1213 = vmatpush1.msra.mxu0 0.0
    %1214 = vmatprep.subr.mxu0 0.0
    %1215 = vmatpush1.msra.mxu0 0.0
    %1216 = vmatprep.subr.mxu0 0.0
    %1217 = vmatpush1.msra.mxu0 0.0
    %1218 = vmatprep.subr.mxu0 0.0
    %1219 = vmatpush1.msra.mxu0 0.0
    %1220 = vmatprep.subr.mxu0 0.0
    %1221 = vmatpush1.msra.mxu0 0.0
    %1222 = vmatprep.subr.mxu0 0.0
    %1223 = vmatpush1.msra.mxu0 0.0
    %1224 = vmatprep.subr.mxu0 0.0
    %1225 = vmatpush1.msra.mxu0 0.0
    %1226 = vmatprep.subr.mxu0 0.0
    %1227 = vmatpush1.msra.mxu0 0.0
    %1228 = vmatprep.subr.mxu0 0.0
    %1229 = vmatpush1.msra.mxu0 0.0
    %1230 = vmatprep.subr.mxu0 0.0
    %1231 = vmatpush1.msra.mxu0 0.0
    %1232 = vmatprep.subr.mxu0 0.0
    %1233 = vmatpush1.msra.mxu0 0.0
    %1234 = vmatprep.subr.mxu0 0.0
    %1235 = vmatpush1.msra.mxu0 0.0
    %1236 = vmatprep.subr.mxu0 0.0
    %1237 = vmatpush1.msra.mxu0 0.0
    %1238 = vmatprep.mubr.f32.mxu0 0.0
    %1239 = vmatmul.mubr.f32.gmra.mrb[0].mxu0 %v176
    %v1240 = vpop.f32.mrb[0].mxu0
    %v1241 = vadd.f32 %v115, %v1240
    %v1242 = vpop.f32.mrb[0].mxu0
    %1243 = vmatprep.mubr.f32.mxu0 0.0
    %1244 = vmatmul.mubr.f32.gmra.mrb[0].mxu0 %v179
    %v1245 = vpop.f32.mrb[0].mxu0
    %v1246 = vadd.f32 %v120, %v1245
    %v1247 = vpop.f32.mrb[0].mxu0
    %1248 = vmatprep.mubr.f32.mxu0 0.0
    %1249 = vmatmul.mubr.f32.gmra.mrb[0].mxu0 %v182
    %v1250 = vpop.f32.mrb[0].mxu0
    %v1251 = vadd.f32 %v125, %v1250
    %v1252 = vpop.f32.mrb[0].mxu0
    %1253 = vmatprep.mubr.f32.mxu0 0.0
    %1254 = vmatmul.mubr.f32.gmra.mrb[0].mxu0 %v185
    %v1255 = vpop.f32.mrb[0].mxu0
    %v1256 = vadd.f32 %v130, %v1255
    %v1257 = vpop.f32.mrb[0].mxu0
    %1258 = vdwg.mxu0
    %v1259 = vld [vmem:[%s1 + $0x7] sm:$0x1]
    %v1260 = vlaneseq
    %v1261 = vshrl.u32 %v1260, 7
    %v1262 = vsub.s32 0, %v1261
    %v1263 = vrot.slane %v1259, %v1262
    %v1264 = vadd.f32 %v1241, %v1263
    %v1265 = vadd.f32 %v1246, %v1263
    %v1266 = vadd.f32 %v1251, %v1263
    %v1267 = vadd.f32 %v1256, %v1263
    %v1268 = vmax.f32 %v1127, %v1264
    %v1269 = vmax.f32 %v1128, %v1265
    %v1270 = vmax.f32 %v1129, %v1266
    %v1271 = vmax.f32 %v1130, %v1267
    %s1272 = scalar_lea.vmem %s0, 16
    %v1273 = vld [vmem:[%s1272] sm:$0x3]
    %v1274 = vunpack.c.l.bf16 %v1273
    %v1275 = vlaneseq
    %v1276 = vshrl.u32 %v1275, 7
    %v1277 = vsub.s32 0, %v1276
    %v1278 = vrot.slane %v1274, %v1277
    %v1279 = vmul.f32 %v35, %v1278
    %v1280 = vmul.f32 %v40, %v1278
    %v1281 = vmul.f32 %v45, %v1278
    %v1282 = vmul.f32 %v50, %v1278
    %v1283 = vadd.f32 %v91, %v1279
    %v1284 = vadd.f32 %v96, %v1280
    %v1285 = vadd.f32 %v101, %v1281
    %v1286 = vadd.f32 %v106, %v1282
    %v1287 = vlaneseq
    %v1288 = vshrl.u32 %v1287, 7
    %v1289 = vsub.s32 1, %v1288
    %v1290 = vrot.slane %v1274, %v1289
    %v1291 = vmul.f32 %v54, %v1290
    %v1292 = vmul.f32 %v58, %v1290
    %v1293 = vmul.f32 %v62, %v1290
    %v1294 = vmul.f32 %v66, %v1290
    %v1295 = vadd.f32 %v1283, %v1291
    %v1296 = vadd.f32 %v1284, %v1292
    %v1297 = vadd.f32 %v1285, %v1293
    %v1298 = vadd.f32 %v1286, %v1294
    %v1299 = vlaneseq
    %v1300 = vshrl.u32 %v1299, 7
    %v1301 = vsub.s32 2, %v1300
    %v1302 = vrot.slane %v1274, %v1301
    %v1303 = vmul.f32 %v70, %v1302
    %v1304 = vmul.f32 %v74, %v1302
    %v1305 = vmul.f32 %v78, %v1302
    %v1306 = vmul.f32 %v82, %v1302
    %v1307 = vadd.f32 %v1295, %v1303
    %v1308 = vadd.f32 %v1296, %v1304
    %v1309 = vadd.f32 %v1297, %v1305
    %v1310 = vadd.f32 %v1298, %v1306
    %v1311 = vmax.f32 %v1307, 0.0
    %v1312 = vmax.f32 %v1308, 0.0
    %v1313 = vmax.f32 %v1309, 0.0
    %v1314 = vmax.f32 %v1310, 0.0
    %1315 = vmatprep.subr.mxu0 0.0
    %1316 = vmatpush1.msra.mxu0 %v1311
    %1317 = vmatprep.subr.mxu0 0.0
    %1318 = vmatpush1.msra.mxu0 %v1312
    %1319 = vmatprep.subr.mxu0 0.0
    %1320 = vmatpush1.msra.mxu0 %v1313
    %1321 = vmatprep.subr.mxu0 0.0
    %1322 = vmatpush1.msra.mxu0 %v1314
    %1323 = vmatprep.subr.mxu0 0.0
    %1324 = vmatpush1.msra.mxu0 0.0
    %1325 = vmatprep.subr.mxu0 0.0
    %1326 = vmatpush1.msra.mxu0 0.0
    %1327 = vmatprep.subr.mxu0 0.0
    %1328 = vmatpush1.msra.mxu0 0.0
    %1329 = vmatprep.subr.mxu0 0.0
    %1330 = vmatpush1.msra.mxu0 0.0
    %1331 = vmatprep.subr.mxu0 0.0
    %1332 = vmatpush1.msra.mxu0 0.0
    %1333 = vmatprep.subr.mxu0 0.0
    %1334 = vmatpush1.msra.mxu0 0.0
    %1335 = vmatprep.subr.mxu0 0.0
    %1336 = vmatpush1.msra.mxu0 0.0
    %1337 = vmatprep.subr.mxu0 0.0
    %1338 = vmatpush1.msra.mxu0 0.0
    %1339 = vmatprep.subr.mxu0 0.0
    %1340 = vmatpush1.msra.mxu0 0.0
    %1341 = vmatprep.subr.mxu0 0.0
    %1342 = vmatpush1.msra.mxu0 0.0
    %1343 = vmatprep.subr.mxu0 0.0
    %1344 = vmatpush1.msra.mxu0 0.0
    %1345 = vmatprep.subr.mxu0 0.0
    %1346 = vmatpush1.msra.mxu0 0.0
    %1347 = vmatprep.subr.mxu0 0.0
    %1348 = vmatpush1.msra.mxu0 0.0
    %1349 = vmatprep.subr.mxu0 0.0
    %1350 = vmatpush1.msra.mxu0 0.0
    %1351 = vmatprep.subr.mxu0 0.0
    %1352 = vmatpush1.msra.mxu0 0.0
    %1353 = vmatprep.subr.mxu0 0.0
    %1354 = vmatpush1.msra.mxu0 0.0
    %1355 = vmatprep.subr.mxu0 0.0
    %1356 = vmatpush1.msra.mxu0 0.0
    %1357 = vmatprep.subr.mxu0 0.0
    %1358 = vmatpush1.msra.mxu0 0.0
    %1359 = vmatprep.subr.mxu0 0.0
    %1360 = vmatpush1.msra.mxu0 0.0
    %1361 = vmatprep.subr.mxu0 0.0
    %1362 = vmatpush1.msra.mxu0 0.0
    %1363 = vmatprep.subr.mxu0 0.0
    %1364 = vmatpush1.msra.mxu0 0.0
    %1365 = vmatprep.subr.mxu0 0.0
    %1366 = vmatpush1.msra.mxu0 0.0
    %1367 = vmatprep.subr.mxu0 0.0
    %1368 = vmatpush1.msra.mxu0 0.0
    %1369 = vmatprep.subr.mxu0 0.0
    %1370 = vmatpush1.msra.mxu0 0.0
    %1371 = vmatprep.subr.mxu0 0.0
    %1372 = vmatpush1.msra.mxu0 0.0
    %1373 = vmatprep.subr.mxu0 0.0
    %1374 = vmatpush1.msra.mxu0 0.0
    %1375 = vmatprep.subr.mxu0 0.0
    %1376 = vmatpush1.msra.mxu0 0.0
    %1377 = vmatprep.subr.mxu0 0.0
    %1378 = vmatpush1.msra.mxu0 0.0
    %1379 = vmatprep.mubr.f32.mxu0 0.0
    %1380 = vmatmul.mubr.f32.gmra.mrb[0].mxu0 %v176
    %v1381 = vpop.f32.mrb[0].mxu0
    %v1382 = vadd.f32 %v115, %v1381
    %v1383 = vpop.f32.mrb[0].mxu0
    %1384 = vmatprep.mubr.f32.mxu0 0.0
    %1385 = vmatmul.mubr.f32.gmra.mrb[0].mxu0 %v179
    %v1386 = vpop.f32.mrb[0].mxu0
    %v1387 = vadd.f32 %v120, %v1386
    %v1388 = vpop.f32.mrb[0].mxu0
    %1389 = vmatprep.mubr.f32.mxu0 0.0
    %1390 = vmatmul.mubr.f32.gmra.mrb[0].mxu0 %v182
    %v1391 = vpop.f32.mrb[0].mxu0
    %v1392 = vadd.f32 %v125, %v1391
    %v1393 = vpop.f32.mrb[0].mxu0
    %1394 = vmatprep.mubr.f32.mxu0 0.0
    %1395 = vmatmul.mubr.f32.gmra.mrb[0].mxu0 %v185
    %v1396 = vpop.f32.mrb[0].mxu0
    %v1397 = vadd.f32 %v130, %v1396
    %v1398 = vpop.f32.mrb[0].mxu0
    %1399 = vdwg.mxu0
    %v1400 = vld [vmem:[%s1 + $0x8] sm:$0x1]
    %v1401 = vlaneseq
    %v1402 = vshrl.u32 %v1401, 7
    %v1403 = vsub.s32 0, %v1402
    %v1404 = vrot.slane %v1400, %v1403
    %v1405 = vadd.f32 %v1382, %v1404
    %v1406 = vadd.f32 %v1387, %v1404
    %v1407 = vadd.f32 %v1392, %v1404
    %v1408 = vadd.f32 %v1397, %v1404
    %v1409 = vmax.f32 %v1268, %v1405
    %v1410 = vmax.f32 %v1269, %v1406
    %v1411 = vmax.f32 %v1270, %v1407
    %v1412 = vmax.f32 %v1271, %v1408
    %s1413 = scalar_lea.vmem %s0, 18
    %v1414 = vld [vmem:[%s1413] sm:$0x3]
    %v1415 = vunpack.c.l.bf16 %v1414
    %v1416 = vlaneseq
    %v1417 = vshrl.u32 %v1416, 7
    %v1418 = vsub.s32 0, %v1417
    %v1419 = vrot.slane %v1415, %v1418
    %v1420 = vmul.f32 %v35, %v1419
    %v1421 = vmul.f32 %v40, %v1419
    %v1422 = vmul.f32 %v45, %v1419
    %v1423 = vmul.f32 %v50, %v1419
    %v1424 = vadd.f32 %v91, %v1420
    %v1425 = vadd.f32 %v96, %v1421
    %v1426 = vadd.f32 %v101, %v1422
    %v1427 = vadd.f32 %v106, %v1423
    %v1428 = vlaneseq
    %v1429 = vshrl.u32 %v1428, 7
    %v1430 = vsub.s32 1, %v1429
    %v1431 = vrot.slane %v1415, %v1430
    %v1432 = vmul.f32 %v54, %v1431
    %v1433 = vmul.f32 %v58, %v1431
    %v1434 = vmul.f32 %v62, %v1431
    %v1435 = vmul.f32 %v66, %v1431
    %v1436 = vadd.f32 %v1424, %v1432
    %v1437 = vadd.f32 %v1425, %v1433
    %v1438 = vadd.f32 %v1426, %v1434
    %v1439 = vadd.f32 %v1427, %v1435
    %v1440 = vlaneseq
    %v1441 = vshrl.u32 %v1440, 7
    %v1442 = vsub.s32 2, %v1441
    %v1443 = vrot.slane %v1415, %v1442
    %v1444 = vmul.f32 %v70, %v1443
    %v1445 = vmul.f32 %v74, %v1443
    %v1446 = vmul.f32 %v78, %v1443
    %v1447 = vmul.f32 %v82, %v1443
    %v1448 = vadd.f32 %v1436, %v1444
    %v1449 = vadd.f32 %v1437, %v1445
    %v1450 = vadd.f32 %v1438, %v1446
    %v1451 = vadd.f32 %v1439, %v1447
    %v1452 = vmax.f32 %v1448, 0.0
    %v1453 = vmax.f32 %v1449, 0.0
    %v1454 = vmax.f32 %v1450, 0.0
    %v1455 = vmax.f32 %v1451, 0.0
    %1456 = vmatprep.subr.mxu0 0.0
    %1457 = vmatpush1.msra.mxu0 %v1452
    %1458 = vmatprep.subr.mxu0 0.0
    %1459 = vmatpush1.msra.mxu0 %v1453
    %1460 = vmatprep.subr.mxu0 0.0
    %1461 = vmatpush1.msra.mxu0 %v1454
    %1462 = vmatprep.subr.mxu0 0.0
    %1463 = vmatpush1.msra.mxu0 %v1455
    %1464 = vmatprep.subr.mxu0 0.0
    %1465 = vmatpush1.msra.mxu0 0.0
    %1466 = vmatprep.subr.mxu0 0.0
    %1467 = vmatpush1.msra.mxu0 0.0
    %1468 = vmatprep.subr.mxu0 0.0
    %1469 = vmatpush1.msra.mxu0 0.0
    %1470 = vmatprep.subr.mxu0 0.0
    %1471 = vmatpush1.msra.mxu0 0.0
    %1472 = vmatprep.subr.mxu0 0.0
    %1473 = vmatpush1.msra.mxu0 0.0
    %1474 = vmatprep.subr.mxu0 0.0
    %1475 = vmatpush1.msra.mxu0 0.0
    %1476 = vmatprep.subr.mxu0 0.0
    %1477 = vmatpush1.msra.mxu0 0.0
    %1478 = vmatprep.subr.mxu0 0.0
    %1479 = vmatpush1.msra.mxu0 0.0
    %1480 = vmatprep.subr.mxu0 0.0
    %1481 = vmatpush1.msra.mxu0 0.0
    %1482 = vmatprep.subr.mxu0 0.0
    %1483 = vmatpush1.msra.mxu0 0.0
    %1484 = vmatprep.subr.mxu0 0.0
    %1485 = vmatpush1.msra.mxu0 0.0
    %1486 = vmatprep.subr.mxu0 0.0
    %1487 = vmatpush1.msra.mxu0 0.0
    %1488 = vmatprep.subr.mxu0 0.0
    %1489 = vmatpush1.msra.mxu0 0.0
    %1490 = vmatprep.subr.mxu0 0.0
    %1491 = vmatpush1.msra.mxu0 0.0
    %1492 = vmatprep.subr.mxu0 0.0
    %1493 = vmatpush1.msra.mxu0 0.0
    %1494 = vmatprep.subr.mxu0 0.0
    %1495 = vmatpush1.msra.mxu0 0.0
    %1496 = vmatprep.subr.mxu0 0.0
    %1497 = vmatpush1.msra.mxu0 0.0
    %1498 = vmatprep.subr.mxu0 0.0
    %1499 = vmatpush1.msra.mxu0 0.0
    %1500 = vmatprep.subr.mxu0 0.0
    %1501 = vmatpush1.msra.mxu0 0.0
    %1502 = vmatprep.subr.mxu0 0.0
    %1503 = vmatpush1.msra.mxu0 0.0
    %1504 = vmatprep.subr.mxu0 0.0
    %1505 = vmatpush1.msra.mxu0 0.0
    %1506 = vmatprep.subr.mxu0 0.0
    %1507 = vmatpush1.msra.mxu0 0.0
    %1508 = vmatprep.subr.mxu0 0.0
    %1509 = vmatpush1.msra.mxu0 0.0
    %1510 = vmatprep.subr.mxu0 0.0
    %1511 = vmatpush1.msra.mxu0 0.0
    %1512 = vmatprep.subr.mxu0 0.0
    %1513 = vmatpush1.msra.mxu0 0.0
    %1514 = vmatprep.subr.mxu0 0.0
    %1515 = vmatpush1.msra.mxu0 0.0
    %1516 = vmatprep.subr.mxu0 0.0
    %1517 = vmatpush1.msra.mxu0 0.0
    %1518 = vmatprep.subr.mxu0 0.0
    %1519 = vmatpush1.msra.mxu0 0.0
    %1520 = vmatprep.mubr.f32.mxu0 0.0
    %1521 = vmatmul.mubr.f32.gmra.mrb[0].mxu0 %v176
    %v1522 = vpop.f32.mrb[0].mxu0
    %v1523 = vadd.f32 %v115, %v1522
    %v1524 = vpop.f32.mrb[0].mxu0
    %1525 = vmatprep.mubr.f32.mxu0 0.0
    %1526 = vmatmul.mubr.f32.gmra.mrb[0].mxu0 %v179
    %v1527 = vpop.f32.mrb[0].mxu0
    %v1528 = vadd.f32 %v120, %v1527
    %v1529 = vpop.f32.mrb[0].mxu0
    %1530 = vmatprep.mubr.f32.mxu0 0.0
    %1531 = vmatmul.mubr.f32.gmra.mrb[0].mxu0 %v182
    %v1532 = vpop.f32.mrb[0].mxu0
    %v1533 = vadd.f32 %v125, %v1532
    %v1534 = vpop.f32.mrb[0].mxu0
    %1535 = vmatprep.mubr.f32.mxu0 0.0
    %1536 = vmatmul.mubr.f32.gmra.mrb[0].mxu0 %v185
    %v1537 = vpop.f32.mrb[0].mxu0
    %v1538 = vadd.f32 %v130, %v1537
    %v1539 = vpop.f32.mrb[0].mxu0
    %1540 = vdwg.mxu0
    %v1541 = vld [vmem:[%s1 + $0x9] sm:$0x1]
    %v1542 = vlaneseq
    %v1543 = vshrl.u32 %v1542, 7
    %v1544 = vsub.s32 0, %v1543
    %v1545 = vrot.slane %v1541, %v1544
    %v1546 = vadd.f32 %v1523, %v1545
    %v1547 = vadd.f32 %v1528, %v1545
    %v1548 = vadd.f32 %v1533, %v1545
    %v1549 = vadd.f32 %v1538, %v1545
    %v1550 = vmax.f32 %v1409, %v1546
    %v1551 = vmax.f32 %v1410, %v1547
    %v1552 = vmax.f32 %v1411, %v1548
    %v1553 = vmax.f32 %v1412, %v1549
    %v1554 = vld [vmem:[%s1] sm:$0xff]
    %v1555 = vld [vmem:[%s1 + $0x8] sm:$0x3]
    %vm1556 = vcmask 1041408
    %v1557 = vsel %vm1556, %v1555, -inf
    %v1558 = vmax.f32 %v1554, %v1557
    %v1559 = vrot.slane %v1558, 4
    %v1560 = vmax.f32 %v1558, %v1559
    %v1561 = vrot.slane %v1560, 2
    %v1562 = vmax.f32 %v1560, %v1561
    %v1563 = vrot.slane %v1562, 1
    %v1564 = vmax.f32 %v1562, %v1563
    %vm1565 = vcmp.gt.f32.partialorder %v1564, -1.0
    %v1566 = vsel %vm1565, 1, 0
    %vm1567 = vcmp.eq.s32.totalorder %v1566, 1
    %v1568 = vsel %vm1567, %v1550, 0.0
    %v1569 = vsel %vm1567, %v1551, 0.0
    %v1570 = vsel %vm1567, %v1552, 0.0
    %v1571 = vsel %vm1567, %v1553, 0.0
    %1572 = vst [vmem:[#allocation2] sm:$0xff] %v1568
    %1573 = vst [vmem:[#allocation2 + $0x8] sm:$0xff] %v1569
    %1574 = vst [vmem:[#allocation2 + $0x10] sm:$0xff] %v1570
    %1575 = vst [vmem:[#allocation2 + $0x18] sm:$0xff] %v1571
    // Predicated region
    $region26: #{tpu_custom_call.1} parent=1 // pred_check
      _
    $region27: #{tpu_custom_call.1} parent=1 // pred_check_branch
      %1577 = sbr.rel (0) target = $region29
    $region28: #{tpu_custom_call.1} parent=1 // pred_region
      %s1579 = ssub.s32 512, 512
      %1580 = vsyncadd [#allocation3], %s1579
      %s1581 = sshll.u32 [#allocation2], 4
      %s1582 = int_to_ptr.vmem [resolvable:$true] %s1581
      %1587 = dma.vmem_to_hbm [thread:$0]  %s1582, 512, %s6, [#allocation3], 128, 128, 8
    $region29: #{tpu_custom_call.1} parent=1 // pred_fallthru
      _
    // Predicated region
    $region30: #{tpu_custom_call.1} parent=1 // pred_check
      _
    $region31: #{tpu_custom_call.1} parent=1 // pred_check_branch
      %1589 = sbr.rel (0) target = $region33
    $region32: #{tpu_custom_call.1} parent=1 // pred_region
      %1590 = dma.done [#allocation3], 512
    $region33: #{tpu_custom_call.1} parent=1 // pred_fallthru
      _
    %1591 = vsyncpa [#allocation3], 1

</llo_original>
